<compile_context>
chip_gen: v6e
topology: v6e:2x2x1
jax: 0.10.0
libtpu: 0.0.40
codegen_flags: <defaults>
</compile_context>

<pallas_src>
import functools
import math

import jax
import jax.numpy as jnp
from jax.experimental import pallas as pl
from jax.experimental.pallas import tpu as pltpu


# ----------------------------- kernel ----------------------------------------


def _fused_self_attention_kernel(q_ref, k_ref, v_ref, bias_ref,
                                 wq_ref, wk_ref, wv_ref, wfc_ref, bfc_ref,
                                 o_ref, *, batch, heads, compute_dtype):
    f32 = jnp.float32
    cdt = compute_dtype
    approx = jnp.dtype(cdt) != jnp.dtype(jnp.float32)

    B = batch * heads                      # fused (batch, heads) leading dim
    D = q_ref.shape[-1]                    # head_dim
    Lq = q_ref.shape[0] // B
    Lk = k_ref.shape[0] // B
    E = wfc_ref.shape[-1]                  # embed_size

    # Shared per-head projections: one 2D matmul per tensor over ALL
    # (batch * heads * seq) rows (no per-head slicing, no block-diag zero padding).
    # Softmax scale is already folded into wq by the wrapper.
    def project(x_ref, w_ref, rows):
        x = x_ref[...].astype(cdt)                                  # (B*L, D)
        w = w_ref[...].astype(cdt)                                   # (D, D)
        y = jnp.dot(x, w, preferred_element_type=f32)                # f32 accumulate
        return y.reshape(B, rows, D).astype(cdt)                     # (B, L, D)

    qp = project(q_ref, wq_ref, Lq)
    kp = project(k_ref, wk_ref, Lk)
    vp = project(v_ref, wv_ref, Lk)

    # Batched QK^T over the fused (batch*heads) dim; no k^T materialization.
    energy = jnp.einsum('bqd,bkd->bqk', qp, kp, preferred_element_type=f32)
    energy = energy + bias_ref[...]                 # additive mask bias (0 / -1e20)

    # Softmax in f32. (Causal/keep-at-least-one masks guarantee denom > 0; guard with
    # an epsilon before shipping if fully-masked rows are possible.)
    energy = energy - jnp.max(energy, axis=-1, keepdims=True)
    p = jnp.exp(energy)
    denom = jnp.sum(p, axis=-1, keepdims=True)
    inv = pl.reciprocal(denom, approx=approx)        # EUP slot on the bf16 path
    attn = (p * inv).astype(cdt)                     # (B, Lq, Lk)

    # attention @ V, then each head's (D, E) slice of fc_out's weight; summing the
    # per-head partials over the heads axis fuses fc_out into this kernel.
    ctx = jnp.einsum('bqk,bkd->bqd', attn, vp, preferred_element_type=f32).astype(cdt)
    part = jnp.einsum('bqd,bde->bqe', ctx, wfc_ref[...].astype(cdt),
                      preferred_element_type=f32)                    # (B, Lq, E)
    out = jnp.sum(part.reshape(batch, heads, Lq, E), axis=1)         # (N, Lq, E)

    o_ref[...] = (out + bfc_ref[...]).astype(o_ref.dtype)


# ----------------------------- wrapper ----------------------------------------


def self_attention_pallas(values, keys, query, mask, params, *, embed_size, heads,
                          compute_dtype=jnp.float32):
    """values/keys/query: (N, L, E) f32; mask broadcastable to (N, heads, Lq, Lk)."""
    wv, wk, wq, wfc, bfc = params
    N, Lq, E = query.shape
    Lk, Lv = keys.shape[1], values.shape[1]
    D = E // heads
    B = N * heads

    def head_major(x, L):
        # (N, L, E) -> (N*heads*L, D): heads become part of the leading batch dim and
        # the shared (D, D) projection can run as one 2D matmul inside the kernel.
        return x.reshape(N, L, heads, D).transpose(0, 2, 1, 3).reshape(B * L, D)

    q2 = head_major(query, Lq)
    k2 = head_major(keys, Lk)
    v2 = head_major(values, Lv)

    # Weights in (in, out) layout; softmax scale folded into wq (one-time, free).
    scale = 1.0 / math.sqrt(embed_size)
    wq_t = (wq.T * jnp.float32(scale)).astype(jnp.float32)
    wk_t = wk.T.astype(jnp.float32)
    wv_t = wv.T.astype(jnp.float32)

    # fc_out weight as per-head (D, E) slices, replicated over batch so the kernel can
    # apply it as one batched matmul and sum over heads.
    # TODO(synk): at production head counts, index the (heads, D, E) tensor from a
    # heads grid axis instead of replicating it across batch.
    wfc_heads = wfc.T.reshape(heads, D, E)
    wfc_b = jnp.broadcast_to(wfc_heads[None], (N, heads, D, E)).reshape(B, D, E)
    wfc_b = wfc_b.astype(jnp.float32)
    bfc2 = bfc.reshape(1, E).astype(jnp.float32)

    # Additive mask bias (0 keep / -1e20 drop), broadcast over heads, f32 always.
    # TODO(synk): for structured causal/length masks generate this in-kernel from
    # broadcasted_iota / scalar-prefetched lengths instead of DMA-ing a dense tensor.
    mask_b = jnp.broadcast_to(mask, (N, heads, Lq, Lk))
    bias = jnp.where(mask_b == 0, jnp.float32(-1e20),
                     jnp.float32(0.0)).reshape(B, Lq, Lk)

    kernel = functools.partial(_fused_self_attention_kernel,
                               batch=N, heads=heads, compute_dtype=compute_dtype)

    vmem = lambda: pl.BlockSpec(memory_space=pltpu.MemorySpace.VMEM)
    return pl.pallas_call(
        kernel,
        out_shape=jax.ShapeDtypeStruct((N, Lq, E), query.dtype),
        in_specs=[vmem() for _ in range(9)],     # whole arrays in VMEM, no grid
        out_specs=vmem(),
    )(q2, k2, v2, bias, wq_t, wk_t, wv_t, wfc_b, bfc2)


# ----------------------------- reference --------------------------------------


def self_attention_reference(values, keys, query, mask, params, *, embed_size, heads):
    wv, wk, wq, wfc, bfc = params
    N, Lq, E = query.shape
    D = E // heads
    v = values.reshape(N, -1, heads, D) @ wv.T
    k = keys.reshape(N, -1, heads, D) @ wk.T
    q = query.reshape(N, Lq, heads, D) @ wq.T
    energy = jnp.einsum('nqhd,nkhd->nhqk', q, k)
    energy = jnp.where(mask == 0, jnp.float32(-1e20), energy)
    attn = jax.nn.softmax(energy / math.sqrt(embed_size), axis=3)
    out = jnp.einsum('nhql,nlhd->nqhd', attn, v).reshape(N, Lq, E)
    return out @ wfc.T + bfc


# ----------------------------- main --------------------------------------------


if __name__ == "__main__":
    embed_size, heads = 32, 4
    head_dim = embed_size // heads
    N, seq = 2, 8

    root = jax.random.PRNGKey(0)
    k_in = jax.random.split(root, 4)
    k_w = jax.random.split(jax.random.fold_in(root, 1), 5)

    def linear_w(k, out_f, in_f):
        bound = 1.0 / math.sqrt(in_f)
        return jax.random.uniform(k, (out_f, in_f), jnp.float32, -bound, bound)

    wv = linear_w(k_w[0], head_dim, head_dim)
    wk = linear_w(k_w[1], head_dim, head_dim)
    wq = linear_w(k_w[2], head_dim, head_dim)
    wfc = linear_w(k_w[3], embed_size, embed_size)
    bfc = jax.random.uniform(k_w[4], (embed_size,), jnp.float32,
                             -1.0 / math.sqrt(embed_size), 1.0 / math.sqrt(embed_size))
    params = (wv, wk, wq, wfc, bfc)

    values = jax.random.normal(k_in[0], (N, seq, embed_size), jnp.float32)
    keys = jax.random.normal(k_in[1], (N, seq, embed_size), jnp.float32)
    query = jax.random.normal(k_in[2], (N, seq, embed_size), jnp.float32)
    # causal mask, shape (N, 1, Lq, Lk), broadcast over heads (as in torch masked_fill)
    mask = jnp.broadcast_to(
        jnp.tril(jnp.ones((seq, seq), jnp.float32))[None, None], (N, 1, seq, seq))

    ref = self_attention_reference(values, keys, query, mask, params,
                                   embed_size=embed_size, heads=heads)

    # Exact-f32 path (matches the PyTorch f32 forward).
    out_f32 = self_attention_pallas(values, keys, query, mask, params,
                                    embed_size=embed_size, heads=heads,
                                    compute_dtype=jnp.float32)
    out_f32 = jax.block_until_ready(out_f32)
    assert out_f32.shape == (N, seq, embed_size)
    assert jnp.allclose(out_f32, ref, rtol=1e-3, atol=1e-3), "f32 path mismatch"

    # bf16 MXU-operand path (f32 accumulation/softmax) — looser tolerance.
    out_bf16 = self_attention_pallas(values, keys, query, mask, params,
                                     embed_size=embed_size, heads=heads,
                                     compute_dtype=jnp.bfloat16)
    out_bf16 = jax.block_until_ready(out_bf16)
    assert jnp.allclose(out_bf16, ref, rtol=5e-2, atol=5e-2), "bf16 path mismatch"

    print("KERNEL_OK")
</pallas_src>

<mosaic_0001>
module attributes {stable_mosaic.version = 11 : i64} {
  func.func @_fused_self_attention_kernel(%arg0: memref<64x8xf32, #tpu.memory_space<vmem>>, %arg1: memref<64x8xf32, #tpu.memory_space<vmem>>, %arg2: memref<64x8xf32, #tpu.memory_space<vmem>>, %arg3: memref<8x8x8xf32, #tpu.memory_space<vmem>>, %arg4: memref<8x8xf32, #tpu.memory_space<vmem>>, %arg5: memref<8x8xf32, #tpu.memory_space<vmem>>, %arg6: memref<8x8xf32, #tpu.memory_space<vmem>>, %arg7: memref<8x8x32xf32, #tpu.memory_space<vmem>>, %arg8: memref<1x32xf32, #tpu.memory_space<vmem>>, %arg9: memref<2x8x32xf32, #tpu.memory_space<vmem>>) attributes {dimension_semantics = [], scalar_prefetch = 0 : i64, scratch_operands = 0 : i64, tpu.core_type = #tpu.core_type<tc>} {
    %c0 = arith.constant 0 : index
    %c0_0 = arith.constant 0 : index
    %0 = vector.load %arg0[%c0, %c0_0] : memref<64x8xf32, #tpu.memory_space<vmem>>, vector<64x8xf32>
    %c0_1 = arith.constant 0 : index
    %c0_2 = arith.constant 0 : index
    %1 = vector.load %arg4[%c0_1, %c0_2] : memref<8x8xf32, #tpu.memory_space<vmem>>, vector<8x8xf32>
    %cst = arith.constant dense<0.000000e+00> : vector<64x8xf32>
    %2 = tpu.matmul %0, %1, %cst {dimension_numbers = #tpu.dot_dimension_numbers<[1], [0], [0], [1], [0, 0, 1, 1], [], []>} : vector<64x8xf32>, vector<8x8xf32>, vector<64x8xf32> -> vector<64x8xf32>
    %3 = vector.shape_cast %2 : vector<64x8xf32> to vector<8x8x8xf32>
    %c0_3 = arith.constant 0 : index
    %c0_4 = arith.constant 0 : index
    %4 = vector.load %arg1[%c0_3, %c0_4] : memref<64x8xf32, #tpu.memory_space<vmem>>, vector<64x8xf32>
    %c0_5 = arith.constant 0 : index
    %c0_6 = arith.constant 0 : index
    %5 = vector.load %arg5[%c0_5, %c0_6] : memref<8x8xf32, #tpu.memory_space<vmem>>, vector<8x8xf32>
    %cst_7 = arith.constant dense<0.000000e+00> : vector<64x8xf32>
    %6 = tpu.matmul %4, %5, %cst_7 {dimension_numbers = #tpu.dot_dimension_numbers<[1], [0], [0], [1], [0, 0, 1, 1], [], []>} : vector<64x8xf32>, vector<8x8xf32>, vector<64x8xf32> -> vector<64x8xf32>
    %7 = vector.shape_cast %6 : vector<64x8xf32> to vector<8x8x8xf32>
    %c0_8 = arith.constant 0 : index
    %c0_9 = arith.constant 0 : index
    %8 = vector.load %arg2[%c0_8, %c0_9] : memref<64x8xf32, #tpu.memory_space<vmem>>, vector<64x8xf32>
    %c0_10 = arith.constant 0 : index
    %c0_11 = arith.constant 0 : index
    %9 = vector.load %arg6[%c0_10, %c0_11] : memref<8x8xf32, #tpu.memory_space<vmem>>, vector<8x8xf32>
    %cst_12 = arith.constant dense<0.000000e+00> : vector<64x8xf32>
    %10 = tpu.matmul %8, %9, %cst_12 {dimension_numbers = #tpu.dot_dimension_numbers<[1], [0], [0], [1], [0, 0, 1, 1], [], []>} : vector<64x8xf32>, vector<8x8xf32>, vector<64x8xf32> -> vector<64x8xf32>
    %11 = vector.shape_cast %10 : vector<64x8xf32> to vector<8x8x8xf32>
    "tpu.trace_start"() <{level = 10 : i32, message = "bqd,bkd->bqk"}> : () -> ()
    %cst_13 = arith.constant dense<0.000000e+00> : vector<8x8x8xf32>
    %12 = tpu.matmul %3, %7, %cst_13 {dimension_numbers = #tpu.dot_dimension_numbers<[2], [2], [1], [1], [0, 0, 0, 1, 1, 1], [0], [0]>} : vector<8x8x8xf32>, vector<8x8x8xf32>, vector<8x8x8xf32> -> vector<8x8x8xf32>
    "tpu.trace_stop"() : () -> ()
    %c0_14 = arith.constant 0 : index
    %c0_15 = arith.constant 0 : index
    %c0_16 = arith.constant 0 : index
    %13 = vector.load %arg3[%c0_14, %c0_15, %c0_16] : memref<8x8x8xf32, #tpu.memory_space<vmem>>, vector<8x8x8xf32>
    %14 = arith.addf %12, %13 : vector<8x8x8xf32>
    %cst_17 = arith.constant dense<0xFF800000> : vector<8x8xf32>
    %15 = vector.multi_reduction <maximumf>, %14, %cst_17 [2] : vector<8x8x8xf32> to vector<8x8xf32>
    %16 = vector.shape_cast %15 : vector<8x8xf32> to vector<8x8x1xf32>
    %17 = vector.broadcast %16 : vector<8x8x1xf32> to vector<8x8x8xf32>
    %18 = arith.subf %14, %17 : vector<8x8x8xf32>
    %19 = math.exp %18 : vector<8x8x8xf32>
    %cst_18 = arith.constant dense<0.000000e+00> : vector<8x8xf32>
    %20 = vector.multi_reduction <add>, %19, %cst_18 [2] : vector<8x8x8xf32> to vector<8x8xf32>
    %21 = vector.shape_cast %20 : vector<8x8xf32> to vector<8x8x1xf32>
    %22 = tpu.reciprocal %21 : vector<8x8x1xf32> -> vector<8x8x1xf32>
    %23 = vector.broadcast %22 : vector<8x8x1xf32> to vector<8x8x8xf32>
    %24 = arith.mulf %19, %23 : vector<8x8x8xf32>
    "tpu.trace_start"() <{level = 10 : i32, message = "bqk,bkd->bqd"}> : () -> ()
    %cst_19 = arith.constant dense<0.000000e+00> : vector<8x8x8xf32>
    %25 = tpu.matmul %24, %11, %cst_19 {dimension_numbers = #tpu.dot_dimension_numbers<[2], [1], [1], [2], [0, 0, 0, 1, 1, 2], [0], [0]>} : vector<8x8x8xf32>, vector<8x8x8xf32>, vector<8x8x8xf32> -> vector<8x8x8xf32>
    "tpu.trace_stop"() : () -> ()
    %c0_20 = arith.constant 0 : index
    %c0_21 = arith.constant 0 : index
    %c0_22 = arith.constant 0 : index
    %26 = vector.load %arg7[%c0_20, %c0_21, %c0_22] : memref<8x8x32xf32, #tpu.memory_space<vmem>>, vector<8x8x32xf32>
    "tpu.trace_start"() <{level = 10 : i32, message = "bqd,bde->bqe"}> : () -> ()
    %cst_23 = arith.constant dense<0.000000e+00> : vector<8x8x32xf32>
    %27 = tpu.matmul %25, %26, %cst_23 {dimension_numbers = #tpu.dot_dimension_numbers<[2], [1], [1], [2], [0, 0, 0, 1, 1, 2], [0], [0]>} : vector<8x8x8xf32>, vector<8x8x32xf32>, vector<8x8x32xf32> -> vector<8x8x32xf32>
    "tpu.trace_stop"() : () -> ()
    %28 = vector.shape_cast %27 : vector<8x8x32xf32> to vector<2x4x8x32xf32>
    %cst_24 = arith.constant dense<0.000000e+00> : vector<2x8x32xf32>
    %29 = vector.multi_reduction <add>, %28, %cst_24 [1] : vector<2x4x8x32xf32> to vector<2x8x32xf32>
    %c0_25 = arith.constant 0 : index
    %c0_26 = arith.constant 0 : index
    %30 = vector.load %arg8[%c0_25, %c0_26] : memref<1x32xf32, #tpu.memory_space<vmem>>, vector<1x32xf32>
    %31 = vector.shape_cast %30 : vector<1x32xf32> to vector<1x1x32xf32>
    %32 = vector.broadcast %31 : vector<1x1x32xf32> to vector<2x8x32xf32>
    %33 = arith.addf %29, %32 : vector<2x8x32xf32>
    %c0_27 = arith.constant 0 : index
    %c0_28 = arith.constant 0 : index
    %c0_29 = arith.constant 0 : index
    %34 = vector.load %arg9[%c0_27, %c0_28, %c0_29] : memref<2x8x32xf32, #tpu.memory_space<vmem>>, vector<2x8x32xf32>
    tpu.vector_store %arg9[%c0_27, %c0_28, %c0_29], %33 {strides = array<i32>} : memref<2x8x32xf32, #tpu.memory_space<vmem>>, vector<2x8x32xf32>,
    return
  }
}

</mosaic_0001>

<llo_original>
// kernel: tpu_custom_call.1
$region0: #{tpu_custom_call.1}
  #allocation0 [shape = 'u32[]', space=smem, size = 0x4, offset = 0x4, fixed_abs, tag = 'smem constant byte address 0x4 - core index']
  #allocation1 [shape = 'u32[144,128]{1,0:T(1,128)}', space=vmem, size = 0x12000, scoped, tag = 'internal scratch']
  %s0 = inlined_call_operand.vmem [shape: f32[64,8], index: 0, kind: input, shape index: {}]
  %s1 = inlined_call_operand.vmem [shape: f32[64,8], index: 1, kind: input, shape index: {}]
  %s2 = inlined_call_operand.vmem [shape: f32[64,8], index: 2, kind: input, shape index: {}]
  %s3 = inlined_call_operand.vmem [shape: f32[8,8,8], index: 3, kind: input, shape index: {}]
  %s4 = inlined_call_operand.vmem [shape: f32[8,8], index: 4, kind: input, shape index: {}]
  %s5 = inlined_call_operand.vmem [shape: f32[8,8], index: 5, kind: input, shape index: {}]
  %s6 = inlined_call_operand.vmem [shape: f32[8,8], index: 6, kind: input, shape index: {}]
  %s7 = inlined_call_operand.vmem [shape: f32[8,8,32], index: 7, kind: input, shape index: {}]
  %s8 = inlined_call_operand.vmem [shape: f32[1,32], index: 8, kind: input, shape index: {}]
  %s9 = inlined_call_operand.hbm [shape: f32[2,8,32], index: 9, kind: output, shape index: {}]
  %s10 = sld [smem:[#allocation0]]
  $region46: #{tpu_custom_call.1} parent=0
    _
  %s12 = ssub.s32 1, %s10
  %s13 = scalar_select 0, %s12, %s10
  $region1: #{tpu_custom_call.1} parent=0
    #allocation2 [shape = 'u8[8192]{0}', space=vmem, size = 0x2000, scoped, tag = 'output window, operand 0, single buffered']
    #allocation3 [shape = 's32[1]{0}', space=sflag, size = 0x4, scoped, tag = 'scoped memory for tpu_custom_call.1']
    %14 = vsyncpa [#allocation3], 0
    // Predicated region
    $region2: #{tpu_custom_call.1} parent=1 // pred_check
      _
    $region3: #{tpu_custom_call.1} parent=1 // pred_check_branch
      %16 = sbr.rel (0) target = $region5
    $region4: #{tpu_custom_call.1} parent=1 // pred_region
      _
    $region5: #{tpu_custom_call.1} parent=1 // pred_fallthru
      _
    // Predicated region
    $region6: #{tpu_custom_call.1} parent=1 // pred_check
      _
    $region7: #{tpu_custom_call.1} parent=1 // pred_check_branch
      %18 = sbr.rel (0) target = $region9
    $region8: #{tpu_custom_call.1} parent=1 // pred_region
      _
    $region9: #{tpu_custom_call.1} parent=1 // pred_fallthru
      _
    // Predicated region
    $region10: #{tpu_custom_call.1} parent=1 // pred_check
      _
    $region11: #{tpu_custom_call.1} parent=1 // pred_check_branch
      %20 = sbr.rel (0) target = $region13
    $region12: #{tpu_custom_call.1} parent=1 // pred_region
      _
    $region13: #{tpu_custom_call.1} parent=1 // pred_fallthru
      _
    // Predicated region
    $region14: #{tpu_custom_call.1} parent=1 // pred_check
      _
    $region15: #{tpu_custom_call.1} parent=1 // pred_check_branch
      %22 = sbr.rel (0) target = $region17
    $region16: #{tpu_custom_call.1} parent=1 // pred_region
      _
    $region17: #{tpu_custom_call.1} parent=1 // pred_fallthru
      _
    // Predicated region
    $region18: #{tpu_custom_call.1} parent=1 // pred_check
      _
    $region19: #{tpu_custom_call.1} parent=1 // pred_check_branch
      %24 = sbr.rel (0) target = $region21
    $region20: #{tpu_custom_call.1} parent=1 // pred_region
      _
    $region21: #{tpu_custom_call.1} parent=1 // pred_fallthru
      _
    // Predicated region
    $region22: #{tpu_custom_call.1} parent=1 // pred_check
      _
    $region23: #{tpu_custom_call.1} parent=1 // pred_check_branch
      %26 = sbr.rel (0) target = $region25
    $region24: #{tpu_custom_call.1} parent=1 // pred_region
      _
    $region25: #{tpu_custom_call.1} parent=1 // pred_fallthru
      _
    // Predicated region
    $region26: #{tpu_custom_call.1} parent=1 // pred_check
      _
    $region27: #{tpu_custom_call.1} parent=1 // pred_check_branch
      %28 = sbr.rel (0) target = $region29
    $region28: #{tpu_custom_call.1} parent=1 // pred_region
      _
    $region29: #{tpu_custom_call.1} parent=1 // pred_fallthru
      _
    // Predicated region
    $region30: #{tpu_custom_call.1} parent=1 // pred_check
      _
    $region31: #{tpu_custom_call.1} parent=1 // pred_check_branch
      %30 = sbr.rel (0) target = $region33
    $region32: #{tpu_custom_call.1} parent=1 // pred_region
      _
    $region33: #{tpu_custom_call.1} parent=1 // pred_fallthru
      _
    // Predicated region
    $region34: #{tpu_custom_call.1} parent=1 // pred_check
      _
    $region35: #{tpu_custom_call.1} parent=1 // pred_check_branch
      %32 = sbr.rel (0) target = $region37
    $region36: #{tpu_custom_call.1} parent=1 // pred_region
      _
    $region37: #{tpu_custom_call.1} parent=1 // pred_fallthru
      _
    %v33 = vld [vmem:[%s0] sm:$0xff]
    %v34 = vld [vmem:[%s0 + $0x8] sm:$0xff]
    %v35 = vld [vmem:[%s0 + $0x10] sm:$0xff]
    %v36 = vld [vmem:[%s0 + $0x18] sm:$0xff]
    %v37 = vld [vmem:[%s0 + $0x20] sm:$0xff]
    %v38 = vld [vmem:[%s0 + $0x28] sm:$0xff]
    %v39 = vld [vmem:[%s0 + $0x30] sm:$0xff]
    %v40 = vld [vmem:[%s0 + $0x38] sm:$0xff]
    %v41 = vld [vmem:[%s4] sm:$0xff]
    %vm42 = vcmask 64512
    %v44 = vsel %vm42, %v33, 0
    %v47 = vsel %vm42, %v34, 0
    %v50 = vsel %vm42, %v35, 0
    %v53 = vsel %vm42, %v36, 0
    %v56 = vsel %vm42, %v37, 0
    %v59 = vsel %vm42, %v38, 0
    %v62 = vsel %vm42, %v39, 0
    %v65 = vsel %vm42, %v40, 0
    %67 = vmatprep.subr.mxu0 0.0
    %68 = vmatpush1.msra.mxu0 0.0
    %69 = vmatprep.subr.mxu0 0.0
    %70 = vmatpush1.msra.mxu0 0.0
    %71 = vmatprep.subr.mxu0 0.0
    %72 = vmatpush1.msra.mxu0 0.0
    %73 = vmatprep.subr.mxu0 0.0
    %74 = vmatpush1.msra.mxu0 0.0
    %75 = vmatprep.subr.mxu0 0.0
    %76 = vmatpush1.msra.mxu0 0.0
    %77 = vmatprep.subr.mxu0 0.0
    %78 = vmatpush1.msra.mxu0 0.0
    %79 = vmatprep.subr.mxu0 0.0
    %80 = vmatpush1.msra.mxu0 0.0
    %81 = vmatprep.subr.mxu0 0.0
    %82 = vmatpush1.msra.mxu0 0.0
    %83 = vmatprep.subr.mxu0 0.0
    %84 = vmatpush1.msra.mxu0 0.0
    %85 = vmatprep.subr.mxu0 0.0
    %86 = vmatpush1.msra.mxu0 0.0
    %87 = vmatprep.subr.mxu0 0.0
    %88 = vmatpush1.msra.mxu0 0.0
    %89 = vmatprep.subr.mxu0 0.0
    %90 = vmatpush1.msra.mxu0 0.0
    %91 = vmatprep.subr.mxu0 0.0
    %92 = vmatpush1.msra.mxu0 0.0
    %93 = vmatprep.subr.mxu0 0.0
    %94 = vmatpush1.msra.mxu0 0.0
    %95 = vmatprep.subr.mxu0 0.0
    %96 = vmatpush1.msra.mxu0 0.0
    %97 = vmatprep.subr.mxu0 0.0
    %98 = vmatpush1.msra.mxu0 %v41
    %99 = vmatprep.subr.mxu0 0.0
    %100 = vmatpush2.msra.mxu0 0.0
    %101 = vmatprep.subr.mxu0 0.0
    %102 = vmatpush2.msra.mxu0 0.0
    %103 = vmatprep.subr.mxu0 0.0
    %104 = vmatpush2.msra.mxu0 0.0
    %105 = vmatprep.subr.mxu0 0.0
    %106 = vmatpush2.msra.mxu0 0.0
    %107 = vmatprep.subr.mxu0 0.0
    %108 = vmatpush2.msra.mxu0 0.0
    %109 = vmatprep.subr.mxu0 0.0
    %110 = vmatpush2.msra.mxu0 0.0
    %111 = vmatprep.subr.mxu0 0.0
    %112 = vmatpush2.msra.mxu0 0.0
    %113 = vmatprep.subr.mxu0 0.0
    %114 = vmatpush2.msra.mxu0 0.0
    %115 = vmatprep.subr.mxu0 0.0
    %116 = vmatpush2.msra.mxu0 0.0
    %117 = vmatprep.subr.mxu0 0.0
    %118 = vmatpush2.msra.mxu0 0.0
    %119 = vmatprep.subr.mxu0 0.0
    %120 = vmatpush2.msra.mxu0 0.0
    %121 = vmatprep.subr.mxu0 0.0
    %122 = vmatpush2.msra.mxu0 0.0
    %123 = vmatprep.subr.mxu0 0.0
    %124 = vmatpush2.msra.mxu0 0.0
    %125 = vmatprep.subr.mxu0 0.0
    %126 = vmatpush2.msra.mxu0 0.0
    %127 = vmatprep.subr.mxu0 0.0
    %128 = vmatpush2.msra.mxu0 0.0
    %129 = vmatprep.subr.mxu0 0.0
    %130 = vmatpush2.msra.mxu0 0.0
    %131 = vmatprep.mubr.f32.mxu0 0.0
    %132 = vmatmul.mubr.f32.gmra.mxu0 %v44
    %v133 = vpop.f32.mrf.mxu0
    %v134 = vadd.f32 0.0, %v133
    %v135 = vpop.f32.mrf.mxu0
    %136 = vmatprep.mubr.f32.mxu0 0.0
    %137 = vmatmul.mubr.f32.gmra.mxu0 %v47
    %v138 = vpop.f32.mrf.mxu0
    %v139 = vadd.f32 0.0, %v138
    %v140 = vpop.f32.mrf.mxu0
    %141 = vmatprep.mubr.f32.mxu0 0.0
    %142 = vmatmul.mubr.f32.gmra.mxu0 %v50
    %v143 = vpop.f32.mrf.mxu0
    %v144 = vadd.f32 0.0, %v143
    %v145 = vpop.f32.mrf.mxu0
    %146 = vmatprep.mubr.f32.mxu0 0.0
    %147 = vmatmul.mubr.f32.gmra.mxu0 %v53
    %v148 = vpop.f32.mrf.mxu0
    %v149 = vadd.f32 0.0, %v148
    %v150 = vpop.f32.mrf.mxu0
    %151 = vmatprep.mubr.f32.mxu0 0.0
    %152 = vmatmul.mubr.f32.gmra.mxu0 %v56
    %v153 = vpop.f32.mrf.mxu0
    %v154 = vadd.f32 0.0, %v153
    %v155 = vpop.f32.mrf.mxu0
    %156 = vmatprep.mubr.f32.mxu0 0.0
    %157 = vmatmul.mubr.f32.gmra.mxu0 %v59
    %v158 = vpop.f32.mrf.mxu0
    %v159 = vadd.f32 0.0, %v158
    %v160 = vpop.f32.mrf.mxu0
    %161 = vmatprep.mubr.f32.mxu0 0.0
    %162 = vmatmul.mubr.f32.gmra.mxu0 %v62
    %v163 = vpop.f32.mrf.mxu0
    %v164 = vadd.f32 0.0, %v163
    %v165 = vpop.f32.mrf.mxu0
    %166 = vmatprep.mubr.f32.mxu0 0.0
    %167 = vmatmul.mubr.f32.gmra.mxu0 %v65
    %v168 = vpop.f32.mrf.mxu0
    %v169 = vadd.f32 0.0, %v168
    %v170 = vpop.f32.mrf.mxu0
    %171 = vdwg.mxu0
    %v172 = vld [vmem:[%s1] sm:$0xff]
    %v173 = vld [vmem:[%s1 + $0x8] sm:$0xff]
    %v174 = vld [vmem:[%s1 + $0x10] sm:$0xff]
    %v175 = vld [vmem:[%s1 + $0x18] sm:$0xff]
    %v176 = vld [vmem:[%s1 + $0x20] sm:$0xff]
    %v177 = vld [vmem:[%s1 + $0x28] sm:$0xff]
    %v178 = vld [vmem:[%s1 + $0x30] sm:$0xff]
    %v179 = vld [vmem:[%s1 + $0x38] sm:$0xff]
    %v180 = vld [vmem:[%s5] sm:$0xff]
    %v182 = vsel %vm42, %v172, 0
    %v185 = vsel %vm42, %v173, 0
    %v188 = vsel %vm42, %v174, 0
    %v191 = vsel %vm42, %v175, 0
    %v194 = vsel %vm42, %v176, 0
    %v197 = vsel %vm42, %v177, 0
    %v200 = vsel %vm42, %v178, 0
    %v203 = vsel %vm42, %v179, 0
    %205 = vmatprep.subr.mxu0 0.0
    %206 = vmatpush1.msra.mxu0 0.0
    %207 = vmatprep.subr.mxu0 0.0
    %208 = vmatpush1.msra.mxu0 0.0
    %209 = vmatprep.subr.mxu0 0.0
    %210 = vmatpush1.msra.mxu0 0.0
    %211 = vmatprep.subr.mxu0 0.0
    %212 = vmatpush1.msra.mxu0 0.0
    %213 = vmatprep.subr.mxu0 0.0
    %214 = vmatpush1.msra.mxu0 0.0
    %215 = vmatprep.subr.mxu0 0.0
    %216 = vmatpush1.msra.mxu0 0.0
    %217 = vmatprep.subr.mxu0 0.0
    %218 = vmatpush1.msra.mxu0 0.0
    %219 = vmatprep.subr.mxu0 0.0
    %220 = vmatpush1.msra.mxu0 0.0
    %221 = vmatprep.subr.mxu0 0.0
    %222 = vmatpush1.msra.mxu0 0.0
    %223 = vmatprep.subr.mxu0 0.0
    %224 = vmatpush1.msra.mxu0 0.0
    %225 = vmatprep.subr.mxu0 0.0
    %226 = vmatpush1.msra.mxu0 0.0
    %227 = vmatprep.subr.mxu0 0.0
    %228 = vmatpush1.msra.mxu0 0.0
    %229 = vmatprep.subr.mxu0 0.0
    %230 = vmatpush1.msra.mxu0 0.0
    %231 = vmatprep.subr.mxu0 0.0
    %232 = vmatpush1.msra.mxu0 0.0
    %233 = vmatprep.subr.mxu0 0.0
    %234 = vmatpush1.msra.mxu0 0.0
    %235 = vmatprep.subr.mxu0 0.0
    %236 = vmatpush1.msra.mxu0 %v180
    %237 = vmatprep.subr.mxu0 0.0
    %238 = vmatpush2.msra.mxu0 0.0
    %239 = vmatprep.subr.mxu0 0.0
    %240 = vmatpush2.msra.mxu0 0.0
    %241 = vmatprep.subr.mxu0 0.0
    %242 = vmatpush2.msra.mxu0 0.0
    %243 = vmatprep.subr.mxu0 0.0
    %244 = vmatpush2.msra.mxu0 0.0
    %245 = vmatprep.subr.mxu0 0.0
    %246 = vmatpush2.msra.mxu0 0.0
    %247 = vmatprep.subr.mxu0 0.0
    %248 = vmatpush2.msra.mxu0 0.0
    %249 = vmatprep.subr.mxu0 0.0
    %250 = vmatpush2.msra.mxu0 0.0
    %251 = vmatprep.subr.mxu0 0.0
    %252 = vmatpush2.msra.mxu0 0.0
    %253 = vmatprep.subr.mxu0 0.0
    %254 = vmatpush2.msra.mxu0 0.0
    %255 = vmatprep.subr.mxu0 0.0
    %256 = vmatpush2.msra.mxu0 0.0
    %257 = vmatprep.subr.mxu0 0.0
    %258 = vmatpush2.msra.mxu0 0.0
    %259 = vmatprep.subr.mxu0 0.0
    %260 = vmatpush2.msra.mxu0 0.0
    %261 = vmatprep.subr.mxu0 0.0
    %262 = vmatpush2.msra.mxu0 0.0
    %263 = vmatprep.subr.mxu0 0.0
    %264 = vmatpush2.msra.mxu0 0.0
    %265 = vmatprep.subr.mxu0 0.0
    %266 = vmatpush2.msra.mxu0 0.0
    %267 = vmatprep.subr.mxu0 0.0
    %268 = vmatpush2.msra.mxu0 0.0
    %269 = vmatprep.mubr.f32.mxu0 0.0
    %270 = vmatmul.mubr.f32.gmra.mxu0 %v182
    %v271 = vpop.f32.mrf.mxu0
    %v272 = vadd.f32 0.0, %v271
    %v273 = vpop.f32.mrf.mxu0
    %274 = vmatprep.mubr.f32.mxu0 0.0
    %275 = vmatmul.mubr.f32.gmra.mxu0 %v185
    %v276 = vpop.f32.mrf.mxu0
    %v277 = vadd.f32 0.0, %v276
    %v278 = vpop.f32.mrf.mxu0
    %279 = vmatprep.mubr.f32.mxu0 0.0
    %280 = vmatmul.mubr.f32.gmra.mxu0 %v188
    %v281 = vpop.f32.mrf.mxu0
    %v282 = vadd.f32 0.0, %v281
    %v283 = vpop.f32.mrf.mxu0
    %284 = vmatprep.mubr.f32.mxu0 0.0
    %285 = vmatmul.mubr.f32.gmra.mxu0 %v191
    %v286 = vpop.f32.mrf.mxu0
    %v287 = vadd.f32 0.0, %v286
    %v288 = vpop.f32.mrf.mxu0
    %289 = vmatprep.mubr.f32.mxu0 0.0
    %290 = vmatmul.mubr.f32.gmra.mxu0 %v194
    %v291 = vpop.f32.mrf.mxu0
    %v292 = vadd.f32 0.0, %v291
    %v293 = vpop.f32.mrf.mxu0
    %294 = vmatprep.mubr.f32.mxu0 0.0
    %295 = vmatmul.mubr.f32.gmra.mxu0 %v197
    %v296 = vpop.f32.mrf.mxu0
    %v297 = vadd.f32 0.0, %v296
    %v298 = vpop.f32.mrf.mxu0
    %299 = vmatprep.mubr.f32.mxu0 0.0
    %300 = vmatmul.mubr.f32.gmra.mxu0 %v200
    %v301 = vpop.f32.mrf.mxu0
    %v302 = vadd.f32 0.0, %v301
    %v303 = vpop.f32.mrf.mxu0
    %304 = vmatprep.mubr.f32.mxu0 0.0
    %305 = vmatmul.mubr.f32.gmra.mxu0 %v203
    %v306 = vpop.f32.mrf.mxu0
    %v307 = vadd.f32 0.0, %v306
    %v308 = vpop.f32.mrf.mxu0
    %309 = vdwg.mxu0
    %v310 = vld [vmem:[%s2] sm:$0xff]
    %v311 = vld [vmem:[%s2 + $0x8] sm:$0xff]
    %v312 = vld [vmem:[%s2 + $0x10] sm:$0xff]
    %v313 = vld [vmem:[%s2 + $0x18] sm:$0xff]
    %v314 = vld [vmem:[%s2 + $0x20] sm:$0xff]
    %v315 = vld [vmem:[%s2 + $0x28] sm:$0xff]
    %v316 = vld [vmem:[%s2 + $0x30] sm:$0xff]
    %v317 = vld [vmem:[%s2 + $0x38] sm:$0xff]
    %v318 = vld [vmem:[%s6] sm:$0xff]
    %v320 = vsel %vm42, %v310, 0
    %v323 = vsel %vm42, %v311, 0
    %v326 = vsel %vm42, %v312, 0
    %v329 = vsel %vm42, %v313, 0
    %v332 = vsel %vm42, %v314, 0
    %v335 = vsel %vm42, %v315, 0
    %v338 = vsel %vm42, %v316, 0
    %v341 = vsel %vm42, %v317, 0
    %343 = vmatprep.subr.mxu0 0.0
    %344 = vmatpush1.msra.mxu0 0.0
    %345 = vmatprep.subr.mxu0 0.0
    %346 = vmatpush1.msra.mxu0 0.0
    %347 = vmatprep.subr.mxu0 0.0
    %348 = vmatpush1.msra.mxu0 0.0
    %349 = vmatprep.subr.mxu0 0.0
    %350 = vmatpush1.msra.mxu0 0.0
    %351 = vmatprep.subr.mxu0 0.0
    %352 = vmatpush1.msra.mxu0 0.0
    %353 = vmatprep.subr.mxu0 0.0
    %354 = vmatpush1.msra.mxu0 0.0
    %355 = vmatprep.subr.mxu0 0.0
    %356 = vmatpush1.msra.mxu0 0.0
    %357 = vmatprep.subr.mxu0 0.0
    %358 = vmatpush1.msra.mxu0 0.0
    %359 = vmatprep.subr.mxu0 0.0
    %360 = vmatpush1.msra.mxu0 0.0
    %361 = vmatprep.subr.mxu0 0.0
    %362 = vmatpush1.msra.mxu0 0.0
    %363 = vmatprep.subr.mxu0 0.0
    %364 = vmatpush1.msra.mxu0 0.0
    %365 = vmatprep.subr.mxu0 0.0
    %366 = vmatpush1.msra.mxu0 0.0
    %367 = vmatprep.subr.mxu0 0.0
    %368 = vmatpush1.msra.mxu0 0.0
    %369 = vmatprep.subr.mxu0 0.0
    %370 = vmatpush1.msra.mxu0 0.0
    %371 = vmatprep.subr.mxu0 0.0
    %372 = vmatpush1.msra.mxu0 0.0
    %373 = vmatprep.subr.mxu0 0.0
    %374 = vmatpush1.msra.mxu0 %v318
    %375 = vmatprep.subr.mxu0 0.0
    %376 = vmatpush2.msra.mxu0 0.0
    %377 = vmatprep.subr.mxu0 0.0
    %378 = vmatpush2.msra.mxu0 0.0
    %379 = vmatprep.subr.mxu0 0.0
    %380 = vmatpush2.msra.mxu0 0.0
    %381 = vmatprep.subr.mxu0 0.0
    %382 = vmatpush2.msra.mxu0 0.0
    %383 = vmatprep.subr.mxu0 0.0
    %384 = vmatpush2.msra.mxu0 0.0
    %385 = vmatprep.subr.mxu0 0.0
    %386 = vmatpush2.msra.mxu0 0.0
    %387 = vmatprep.subr.mxu0 0.0
    %388 = vmatpush2.msra.mxu0 0.0
    %389 = vmatprep.subr.mxu0 0.0
    %390 = vmatpush2.msra.mxu0 0.0
    %391 = vmatprep.subr.mxu0 0.0
    %392 = vmatpush2.msra.mxu0 0.0
    %393 = vmatprep.subr.mxu0 0.0
    %394 = vmatpush2.msra.mxu0 0.0
    %395 = vmatprep.subr.mxu0 0.0
    %396 = vmatpush2.msra.mxu0 0.0
    %397 = vmatprep.subr.mxu0 0.0
    %398 = vmatpush2.msra.mxu0 0.0
    %399 = vmatprep.subr.mxu0 0.0
    %400 = vmatpush2.msra.mxu0 0.0
    %401 = vmatprep.subr.mxu0 0.0
    %402 = vmatpush2.msra.mxu0 0.0
    %403 = vmatprep.subr.mxu0 0.0
    %404 = vmatpush2.msra.mxu0 0.0
    %405 = vmatprep.subr.mxu0 0.0
    %406 = vmatpush2.msra.mxu0 0.0
    %407 = vmatprep.mubr.f32.mxu0 0.0
    %408 = vmatmul.mubr.f32.gmra.mxu0 %v320
    %v409 = vpop.f32.mrf.mxu0
    %v410 = vadd.f32 0.0, %v409
    %v411 = vpop.f32.mrf.mxu0
    %412 = vmatprep.mubr.f32.mxu0 0.0
    %413 = vmatmul.mubr.f32.gmra.mxu0 %v323
    %v414 = vpop.f32.mrf.mxu0
    %v415 = vadd.f32 0.0, %v414
    %v416 = vpop.f32.mrf.mxu0
    %417 = vmatprep.mubr.f32.mxu0 0.0
    %418 = vmatmul.mubr.f32.gmra.mxu0 %v326
    %v419 = vpop.f32.mrf.mxu0
    %v420 = vadd.f32 0.0, %v419
    %v421 = vpop.f32.mrf.mxu0
    %422 = vmatprep.mubr.f32.mxu0 0.0
    %423 = vmatmul.mubr.f32.gmra.mxu0 %v329
    %v424 = vpop.f32.mrf.mxu0
    %v425 = vadd.f32 0.0, %v424
    %v426 = vpop.f32.mrf.mxu0
    %427 = vmatprep.mubr.f32.mxu0 0.0
    %428 = vmatmul.mubr.f32.gmra.mxu0 %v332
    %v429 = vpop.f32.mrf.mxu0
    %v430 = vadd.f32 0.0, %v429
    %v431 = vpop.f32.mrf.mxu0
    %432 = vmatprep.mubr.f32.mxu0 0.0
    %433 = vmatmul.mubr.f32.gmra.mxu0 %v335
    %v434 = vpop.f32.mrf.mxu0
    %v435 = vadd.f32 0.0, %v434
    %v436 = vpop.f32.mrf.mxu0
    %437 = vmatprep.mubr.f32.mxu0 0.0
    %438 = vmatmul.mubr.f32.gmra.mxu0 %v338
    %v439 = vpop.f32.mrf.mxu0
    %v440 = vadd.f32 0.0, %v439
    %v441 = vpop.f32.mrf.mxu0
    %442 = vmatprep.mubr.f32.mxu0 0.0
    %443 = vmatmul.mubr.f32.gmra.mxu0 %v341
    %v444 = vpop.f32.mrf.mxu0
    %v445 = vadd.f32 0.0, %v444
    %v446 = vpop.f32.mrf.mxu0
    %447 = vdwg.mxu0
    %v448 = vld [vmem:[%s3] sm:$0xff]
    %v449 = vld [vmem:[%s3 + $0x8] sm:$0xff]
    %v450 = vld [vmem:[%s3 + $0x10] sm:$0xff]
    %v451 = vld [vmem:[%s3 + $0x18] sm:$0xff]
    %v452 = vld [vmem:[%s3 + $0x20] sm:$0xff]
    %v453 = vld [vmem:[%s3 + $0x28] sm:$0xff]
    %v454 = vld [vmem:[%s3 + $0x30] sm:$0xff]
    %v455 = vld [vmem:[%s3 + $0x38] sm:$0xff]
    %v457 = vsel %vm42, %v134, 0
    %v460 = vsel %vm42, %v272, 0
    %462 = vmatprep.subr.mxu0 0.0
    %463 = vmatpush1.xpose.msra.mxu0 0.0
    %464 = vmatprep.subr.mxu0 0.0
    %465 = vmatpush1.xpose.msra.mxu0 0.0
    %466 = vmatprep.subr.mxu0 0.0
    %467 = vmatpush1.xpose.msra.mxu0 0.0
    %468 = vmatprep.subr.mxu0 0.0
    %469 = vmatpush1.xpose.msra.mxu0 0.0
    %470 = vmatprep.subr.mxu0 0.0
    %471 = vmatpush1.xpose.msra.mxu0 0.0
    %472 = vmatprep.subr.mxu0 0.0
    %473 = vmatpush1.xpose.msra.mxu0 0.0
    %474 = vmatprep.subr.mxu0 0.0
    %475 = vmatpush1.xpose.msra.mxu0 0.0
    %476 = vmatprep.subr.mxu0 0.0
    %477 = vmatpush1.xpose.msra.mxu0 0.0
    %478 = vmatprep.subr.mxu0 0.0
    %479 = vmatpush1.xpose.msra.mxu0 0.0
    %480 = vmatprep.subr.mxu0 0.0
    %481 = vmatpush1.xpose.msra.mxu0 0.0
    %482 = vmatprep.subr.mxu0 0.0
    %483 = vmatpush1.xpose.msra.mxu0 0.0
    %484 = vmatprep.subr.mxu0 0.0
    %485 = vmatpush1.xpose.msra.mxu0 0.0
    %486 = vmatprep.subr.mxu0 0.0
    %487 = vmatpush1.xpose.msra.mxu0 0.0
    %488 = vmatprep.subr.mxu0 0.0
    %489 = vmatpush1.xpose.msra.mxu0 0.0
    %490 = vmatprep.subr.mxu0 0.0
    %491 = vmatpush1.xpose.msra.mxu0 0.0
    %492 = vmatprep.subr.mxu0 0.0
    %493 = vmatpush1.xpose.msra.mxu0 %v460
    %494 = vmatprep.subr.mxu0 0.0
    %495 = vmatpush2.xpose.msra.mxu0 0.0
    %496 = vmatprep.subr.mxu0 0.0
    %497 = vmatpush2.xpose.msra.mxu0 0.0
    %498 = vmatprep.subr.mxu0 0.0
    %499 = vmatpush2.xpose.msra.mxu0 0.0
    %500 = vmatprep.subr.mxu0 0.0
    %501 = vmatpush2.xpose.msra.mxu0 0.0
    %502 = vmatprep.subr.mxu0 0.0
    %503 = vmatpush2.xpose.msra.mxu0 0.0
    %504 = vmatprep.subr.mxu0 0.0
    %505 = vmatpush2.xpose.msra.mxu0 0.0
    %506 = vmatprep.subr.mxu0 0.0
    %507 = vmatpush2.xpose.msra.mxu0 0.0
    %508 = vmatprep.subr.mxu0 0.0
    %509 = vmatpush2.xpose.msra.mxu0 0.0
    %510 = vmatprep.subr.mxu0 0.0
    %511 = vmatpush2.xpose.msra.mxu0 0.0
    %512 = vmatprep.subr.mxu0 0.0
    %513 = vmatpush2.xpose.msra.mxu0 0.0
    %514 = vmatprep.subr.mxu0 0.0
    %515 = vmatpush2.xpose.msra.mxu0 0.0
    %516 = vmatprep.subr.mxu0 0.0
    %517 = vmatpush2.xpose.msra.mxu0 0.0
    %518 = vmatprep.subr.mxu0 0.0
    %519 = vmatpush2.xpose.msra.mxu0 0.0
    %520 = vmatprep.subr.mxu0 0.0
    %521 = vmatpush2.xpose.msra.mxu0 0.0
    %522 = vmatprep.subr.mxu0 0.0
    %523 = vmatpush2.xpose.msra.mxu0 0.0
    %524 = vmatprep.subr.mxu0 0.0
    %525 = vmatpush2.xpose.msra.mxu0 0.0
    %526 = vmatprep.mubr.f32.mxu0 0.0
    %527 = vmatmul.mubr.f32.gmra.mxu0 %v457
    %v528 = vpop.f32.mrf.mxu0
    %v529 = vadd.f32 %v448, %v528
    %v530 = vpop.f32.mrf.mxu0
    %531 = vdwg.mxu0
    %v533 = vsel %vm42, %v139, 0
    %v536 = vsel %vm42, %v277, 0
    %538 = vmatprep.subr.mxu0 0.0
    %539 = vmatpush1.xpose.msra.mxu0 0.0
    %540 = vmatprep.subr.mxu0 0.0
    %541 = vmatpush1.xpose.msra.mxu0 0.0
    %542 = vmatprep.subr.mxu0 0.0
    %543 = vmatpush1.xpose.msra.mxu0 0.0
    %544 = vmatprep.subr.mxu0 0.0
    %545 = vmatpush1.xpose.msra.mxu0 0.0
    %546 = vmatprep.subr.mxu0 0.0
    %547 = vmatpush1.xpose.msra.mxu0 0.0
    %548 = vmatprep.subr.mxu0 0.0
    %549 = vmatpush1.xpose.msra.mxu0 0.0
    %550 = vmatprep.subr.mxu0 0.0
    %551 = vmatpush1.xpose.msra.mxu0 0.0
    %552 = vmatprep.subr.mxu0 0.0
    %553 = vmatpush1.xpose.msra.mxu0 0.0
    %554 = vmatprep.subr.mxu0 0.0
    %555 = vmatpush1.xpose.msra.mxu0 0.0
    %556 = vmatprep.subr.mxu0 0.0
    %557 = vmatpush1.xpose.msra.mxu0 0.0
    %558 = vmatprep.subr.mxu0 0.0
    %559 = vmatpush1.xpose.msra.mxu0 0.0
    %560 = vmatprep.subr.mxu0 0.0
    %561 = vmatpush1.xpose.msra.mxu0 0.0
    %562 = vmatprep.subr.mxu0 0.0
    %563 = vmatpush1.xpose.msra.mxu0 0.0
    %564 = vmatprep.subr.mxu0 0.0
    %565 = vmatpush1.xpose.msra.mxu0 0.0
    %566 = vmatprep.subr.mxu0 0.0
    %567 = vmatpush1.xpose.msra.mxu0 0.0
    %568 = vmatprep.subr.mxu0 0.0
    %569 = vmatpush1.xpose.msra.mxu0 %v536
    %570 = vmatprep.subr.mxu0 0.0
    %571 = vmatpush2.xpose.msra.mxu0 0.0
    %572 = vmatprep.subr.mxu0 0.0
    %573 = vmatpush2.xpose.msra.mxu0 0.0
    %574 = vmatprep.subr.mxu0 0.0
    %575 = vmatpush2.xpose.msra.mxu0 0.0
    %576 = vmatprep.subr.mxu0 0.0
    %577 = vmatpush2.xpose.msra.mxu0 0.0
    %578 = vmatprep.subr.mxu0 0.0
    %579 = vmatpush2.xpose.msra.mxu0 0.0
    %580 = vmatprep.subr.mxu0 0.0
    %581 = vmatpush2.xpose.msra.mxu0 0.0
    %582 = vmatprep.subr.mxu0 0.0
    %583 = vmatpush2.xpose.msra.mxu0 0.0
    %584 = vmatprep.subr.mxu0 0.0
    %585 = vmatpush2.xpose.msra.mxu0 0.0
    %586 = vmatprep.subr.mxu0 0.0
    %587 = vmatpush2.xpose.msra.mxu0 0.0
    %588 = vmatprep.subr.mxu0 0.0
    %589 = vmatpush2.xpose.msra.mxu0 0.0
    %590 = vmatprep.subr.mxu0 0.0
    %591 = vmatpush2.xpose.msra.mxu0 0.0
    %592 = vmatprep.subr.mxu0 0.0
    %593 = vmatpush2.xpose.msra.mxu0 0.0
    %594 = vmatprep.subr.mxu0 0.0
    %595 = vmatpush2.xpose.msra.mxu0 0.0
    %596 = vmatprep.subr.mxu0 0.0
    %597 = vmatpush2.xpose.msra.mxu0 0.0
    %598 = vmatprep.subr.mxu0 0.0
    %599 = vmatpush2.xpose.msra.mxu0 0.0
    %600 = vmatprep.subr.mxu0 0.0
    %601 = vmatpush2.xpose.msra.mxu0 0.0
    %602 = vmatprep.mubr.f32.mxu0 0.0
    %603 = vmatmul.mubr.f32.gmra.mxu0 %v533
    %v604 = vpop.f32.mrf.mxu0
    %v605 = vadd.f32 %v449, %v604
    %v606 = vpop.f32.mrf.mxu0
    %607 = vdwg.mxu0
    %v609 = vsel %vm42, %v144, 0
    %v612 = vsel %vm42, %v282, 0
    %614 = vmatprep.subr.mxu0 0.0
    %615 = vmatpush1.xpose.msra.mxu0 0.0
    %616 = vmatprep.subr.mxu0 0.0
    %617 = vmatpush1.xpose.msra.mxu0 0.0
    %618 = vmatprep.subr.mxu0 0.0
    %619 = vmatpush1.xpose.msra.mxu0 0.0
    %620 = vmatprep.subr.mxu0 0.0
    %621 = vmatpush1.xpose.msra.mxu0 0.0
    %622 = vmatprep.subr.mxu0 0.0
    %623 = vmatpush1.xpose.msra.mxu0 0.0
    %624 = vmatprep.subr.mxu0 0.0
    %625 = vmatpush1.xpose.msra.mxu0 0.0
    %626 = vmatprep.subr.mxu0 0.0
    %627 = vmatpush1.xpose.msra.mxu0 0.0
    %628 = vmatprep.subr.mxu0 0.0
    %629 = vmatpush1.xpose.msra.mxu0 0.0
    %630 = vmatprep.subr.mxu0 0.0
    %631 = vmatpush1.xpose.msra.mxu0 0.0
    %632 = vmatprep.subr.mxu0 0.0
    %633 = vmatpush1.xpose.msra.mxu0 0.0
    %634 = vmatprep.subr.mxu0 0.0
    %635 = vmatpush1.xpose.msra.mxu0 0.0
    %636 = vmatprep.subr.mxu0 0.0
    %637 = vmatpush1.xpose.msra.mxu0 0.0
    %638 = vmatprep.subr.mxu0 0.0
    %639 = vmatpush1.xpose.msra.mxu0 0.0
    %640 = vmatprep.subr.mxu0 0.0
    %641 = vmatpush1.xpose.msra.mxu0 0.0
    %642 = vmatprep.subr.mxu0 0.0
    %643 = vmatpush1.xpose.msra.mxu0 0.0
    %644 = vmatprep.subr.mxu0 0.0
    %645 = vmatpush1.xpose.msra.mxu0 %v612
    %646 = vmatprep.subr.mxu0 0.0
    %647 = vmatpush2.xpose.msra.mxu0 0.0
    %648 = vmatprep.subr.mxu0 0.0
    %649 = vmatpush2.xpose.msra.mxu0 0.0
    %650 = vmatprep.subr.mxu0 0.0
    %651 = vmatpush2.xpose.msra.mxu0 0.0
    %652 = vmatprep.subr.mxu0 0.0
    %653 = vmatpush2.xpose.msra.mxu0 0.0
    %654 = vmatprep.subr.mxu0 0.0
    %655 = vmatpush2.xpose.msra.mxu0 0.0
    %656 = vmatprep.subr.mxu0 0.0
    %657 = vmatpush2.xpose.msra.mxu0 0.0
    %658 = vmatprep.subr.mxu0 0.0
    %659 = vmatpush2.xpose.msra.mxu0 0.0
    %660 = vmatprep.subr.mxu0 0.0
    %661 = vmatpush2.xpose.msra.mxu0 0.0
    %662 = vmatprep.subr.mxu0 0.0
    %663 = vmatpush2.xpose.msra.mxu0 0.0
    %664 = vmatprep.subr.mxu0 0.0
    %665 = vmatpush2.xpose.msra.mxu0 0.0
    %666 = vmatprep.subr.mxu0 0.0
    %667 = vmatpush2.xpose.msra.mxu0 0.0
    %668 = vmatprep.subr.mxu0 0.0
    %669 = vmatpush2.xpose.msra.mxu0 0.0
    %670 = vmatprep.subr.mxu0 0.0
    %671 = vmatpush2.xpose.msra.mxu0 0.0
    %672 = vmatprep.subr.mxu0 0.0
    %673 = vmatpush2.xpose.msra.mxu0 0.0
    %674 = vmatprep.subr.mxu0 0.0
    %675 = vmatpush2.xpose.msra.mxu0 0.0
    %676 = vmatprep.subr.mxu0 0.0
    %677 = vmatpush2.xpose.msra.mxu0 0.0
    %678 = vmatprep.mubr.f32.mxu0 0.0
    %679 = vmatmul.mubr.f32.gmra.mxu0 %v609
    %v680 = vpop.f32.mrf.mxu0
    %v681 = vadd.f32 %v450, %v680
    %v682 = vpop.f32.mrf.mxu0
    %683 = vdwg.mxu0
    %v685 = vsel %vm42, %v149, 0
    %v688 = vsel %vm42, %v287, 0
    %690 = vmatprep.subr.mxu0 0.0
    %691 = vmatpush1.xpose.msra.mxu0 0.0
    %692 = vmatprep.subr.mxu0 0.0
    %693 = vmatpush1.xpose.msra.mxu0 0.0
    %694 = vmatprep.subr.mxu0 0.0
    %695 = vmatpush1.xpose.msra.mxu0 0.0
    %696 = vmatprep.subr.mxu0 0.0
    %697 = vmatpush1.xpose.msra.mxu0 0.0
    %698 = vmatprep.subr.mxu0 0.0
    %699 = vmatpush1.xpose.msra.mxu0 0.0
    %700 = vmatprep.subr.mxu0 0.0
    %701 = vmatpush1.xpose.msra.mxu0 0.0
    %702 = vmatprep.subr.mxu0 0.0
    %703 = vmatpush1.xpose.msra.mxu0 0.0
    %704 = vmatprep.subr.mxu0 0.0
    %705 = vmatpush1.xpose.msra.mxu0 0.0
    %706 = vmatprep.subr.mxu0 0.0
    %707 = vmatpush1.xpose.msra.mxu0 0.0
    %708 = vmatprep.subr.mxu0 0.0
    %709 = vmatpush1.xpose.msra.mxu0 0.0
    %710 = vmatprep.subr.mxu0 0.0
    %711 = vmatpush1.xpose.msra.mxu0 0.0
    %712 = vmatprep.subr.mxu0 0.0
    %713 = vmatpush1.xpose.msra.mxu0 0.0
    %714 = vmatprep.subr.mxu0 0.0
    %715 = vmatpush1.xpose.msra.mxu0 0.0
    %716 = vmatprep.subr.mxu0 0.0
    %717 = vmatpush1.xpose.msra.mxu0 0.0
    %718 = vmatprep.subr.mxu0 0.0
    %719 = vmatpush1.xpose.msra.mxu0 0.0
    %720 = vmatprep.subr.mxu0 0.0
    %721 = vmatpush1.xpose.msra.mxu0 %v688
    %722 = vmatprep.subr.mxu0 0.0
    %723 = vmatpush2.xpose.msra.mxu0 0.0
    %724 = vmatprep.subr.mxu0 0.0
    %725 = vmatpush2.xpose.msra.mxu0 0.0
    %726 = vmatprep.subr.mxu0 0.0
    %727 = vmatpush2.xpose.msra.mxu0 0.0
    %728 = vmatprep.subr.mxu0 0.0
    %729 = vmatpush2.xpose.msra.mxu0 0.0
    %730 = vmatprep.subr.mxu0 0.0
    %731 = vmatpush2.xpose.msra.mxu0 0.0
    %732 = vmatprep.subr.mxu0 0.0
    %733 = vmatpush2.xpose.msra.mxu0 0.0
    %734 = vmatprep.subr.mxu0 0.0
    %735 = vmatpush2.xpose.msra.mxu0 0.0
    %736 = vmatprep.subr.mxu0 0.0
    %737 = vmatpush2.xpose.msra.mxu0 0.0
    %738 = vmatprep.subr.mxu0 0.0
    %739 = vmatpush2.xpose.msra.mxu0 0.0
    %740 = vmatprep.subr.mxu0 0.0
    %741 = vmatpush2.xpose.msra.mxu0 0.0
    %742 = vmatprep.subr.mxu0 0.0
    %743 = vmatpush2.xpose.msra.mxu0 0.0
    %744 = vmatprep.subr.mxu0 0.0
    %745 = vmatpush2.xpose.msra.mxu0 0.0
    %746 = vmatprep.subr.mxu0 0.0
    %747 = vmatpush2.xpose.msra.mxu0 0.0
    %748 = vmatprep.subr.mxu0 0.0
    %749 = vmatpush2.xpose.msra.mxu0 0.0
    %750 = vmatprep.subr.mxu0 0.0
    %751 = vmatpush2.xpose.msra.mxu0 0.0
    %752 = vmatprep.subr.mxu0 0.0
    %753 = vmatpush2.xpose.msra.mxu0 0.0
    %754 = vmatprep.mubr.f32.mxu0 0.0
    %755 = vmatmul.mubr.f32.gmra.mxu0 %v685
    %v756 = vpop.f32.mrf.mxu0
    %v757 = vadd.f32 %v451, %v756
    %v758 = vpop.f32.mrf.mxu0
    %759 = vdwg.mxu0
    %v761 = vsel %vm42, %v154, 0
    %v764 = vsel %vm42, %v292, 0
    %766 = vmatprep.subr.mxu0 0.0
    %767 = vmatpush1.xpose.msra.mxu0 0.0
    %768 = vmatprep.subr.mxu0 0.0
    %769 = vmatpush1.xpose.msra.mxu0 0.0
    %770 = vmatprep.subr.mxu0 0.0
    %771 = vmatpush1.xpose.msra.mxu0 0.0
    %772 = vmatprep.subr.mxu0 0.0
    %773 = vmatpush1.xpose.msra.mxu0 0.0
    %774 = vmatprep.subr.mxu0 0.0
    %775 = vmatpush1.xpose.msra.mxu0 0.0
    %776 = vmatprep.subr.mxu0 0.0
    %777 = vmatpush1.xpose.msra.mxu0 0.0
    %778 = vmatprep.subr.mxu0 0.0
    %779 = vmatpush1.xpose.msra.mxu0 0.0
    %780 = vmatprep.subr.mxu0 0.0
    %781 = vmatpush1.xpose.msra.mxu0 0.0
    %782 = vmatprep.subr.mxu0 0.0
    %783 = vmatpush1.xpose.msra.mxu0 0.0
    %784 = vmatprep.subr.mxu0 0.0
    %785 = vmatpush1.xpose.msra.mxu0 0.0
    %786 = vmatprep.subr.mxu0 0.0
    %787 = vmatpush1.xpose.msra.mxu0 0.0
    %788 = vmatprep.subr.mxu0 0.0
    %789 = vmatpush1.xpose.msra.mxu0 0.0
    %790 = vmatprep.subr.mxu0 0.0
    %791 = vmatpush1.xpose.msra.mxu0 0.0
    %792 = vmatprep.subr.mxu0 0.0
    %793 = vmatpush1.xpose.msra.mxu0 0.0
    %794 = vmatprep.subr.mxu0 0.0
    %795 = vmatpush1.xpose.msra.mxu0 0.0
    %796 = vmatprep.subr.mxu0 0.0
    %797 = vmatpush1.xpose.msra.mxu0 %v764
    %798 = vmatprep.subr.mxu0 0.0
    %799 = vmatpush2.xpose.msra.mxu0 0.0
    %800 = vmatprep.subr.mxu0 0.0
    %801 = vmatpush2.xpose.msra.mxu0 0.0
    %802 = vmatprep.subr.mxu0 0.0
    %803 = vmatpush2.xpose.msra.mxu0 0.0
    %804 = vmatprep.subr.mxu0 0.0
    %805 = vmatpush2.xpose.msra.mxu0 0.0
    %806 = vmatprep.subr.mxu0 0.0
    %807 = vmatpush2.xpose.msra.mxu0 0.0
    %808 = vmatprep.subr.mxu0 0.0
    %809 = vmatpush2.xpose.msra.mxu0 0.0
    %810 = vmatprep.subr.mxu0 0.0
    %811 = vmatpush2.xpose.msra.mxu0 0.0
    %812 = vmatprep.subr.mxu0 0.0
    %813 = vmatpush2.xpose.msra.mxu0 0.0
    %814 = vmatprep.subr.mxu0 0.0
    %815 = vmatpush2.xpose.msra.mxu0 0.0
    %816 = vmatprep.subr.mxu0 0.0
    %817 = vmatpush2.xpose.msra.mxu0 0.0
    %818 = vmatprep.subr.mxu0 0.0
    %819 = vmatpush2.xpose.msra.mxu0 0.0
    %820 = vmatprep.subr.mxu0 0.0
    %821 = vmatpush2.xpose.msra.mxu0 0.0
    %822 = vmatprep.subr.mxu0 0.0
    %823 = vmatpush2.xpose.msra.mxu0 0.0
    %824 = vmatprep.subr.mxu0 0.0
    %825 = vmatpush2.xpose.msra.mxu0 0.0
    %826 = vmatprep.subr.mxu0 0.0
    %827 = vmatpush2.xpose.msra.mxu0 0.0
    %828 = vmatprep.subr.mxu0 0.0
    %829 = vmatpush2.xpose.msra.mxu0 0.0
    %830 = vmatprep.mubr.f32.mxu0 0.0
    %831 = vmatmul.mubr.f32.gmra.mxu0 %v761
    %v832 = vpop.f32.mrf.mxu0
    %v833 = vadd.f32 %v452, %v832
    %v834 = vpop.f32.mrf.mxu0
    %835 = vdwg.mxu0
    %v837 = vsel %vm42, %v159, 0
    %v840 = vsel %vm42, %v297, 0
    %842 = vmatprep.subr.mxu0 0.0
    %843 = vmatpush1.xpose.msra.mxu0 0.0
    %844 = vmatprep.subr.mxu0 0.0
    %845 = vmatpush1.xpose.msra.mxu0 0.0
    %846 = vmatprep.subr.mxu0 0.0
    %847 = vmatpush1.xpose.msra.mxu0 0.0
    %848 = vmatprep.subr.mxu0 0.0
    %849 = vmatpush1.xpose.msra.mxu0 0.0
    %850 = vmatprep.subr.mxu0 0.0
    %851 = vmatpush1.xpose.msra.mxu0 0.0
    %852 = vmatprep.subr.mxu0 0.0
    %853 = vmatpush1.xpose.msra.mxu0 0.0
    %854 = vmatprep.subr.mxu0 0.0
    %855 = vmatpush1.xpose.msra.mxu0 0.0
    %856 = vmatprep.subr.mxu0 0.0
    %857 = vmatpush1.xpose.msra.mxu0 0.0
    %858 = vmatprep.subr.mxu0 0.0
    %859 = vmatpush1.xpose.msra.mxu0 0.0
    %860 = vmatprep.subr.mxu0 0.0
    %861 = vmatpush1.xpose.msra.mxu0 0.0
    %862 = vmatprep.subr.mxu0 0.0
    %863 = vmatpush1.xpose.msra.mxu0 0.0
    %864 = vmatprep.subr.mxu0 0.0
    %865 = vmatpush1.xpose.msra.mxu0 0.0
    %866 = vmatprep.subr.mxu0 0.0
    %867 = vmatpush1.xpose.msra.mxu0 0.0
    %868 = vmatprep.subr.mxu0 0.0
    %869 = vmatpush1.xpose.msra.mxu0 0.0
    %870 = vmatprep.subr.mxu0 0.0
    %871 = vmatpush1.xpose.msra.mxu0 0.0
    %872 = vmatprep.subr.mxu0 0.0
    %873 = vmatpush1.xpose.msra.mxu0 %v840
    %874 = vmatprep.subr.mxu0 0.0
    %875 = vmatpush2.xpose.msra.mxu0 0.0
    %876 = vmatprep.subr.mxu0 0.0
    %877 = vmatpush2.xpose.msra.mxu0 0.0
    %878 = vmatprep.subr.mxu0 0.0
    %879 = vmatpush2.xpose.msra.mxu0 0.0
    %880 = vmatprep.subr.mxu0 0.0
    %881 = vmatpush2.xpose.msra.mxu0 0.0
    %882 = vmatprep.subr.mxu0 0.0
    %883 = vmatpush2.xpose.msra.mxu0 0.0
    %884 = vmatprep.subr.mxu0 0.0
    %885 = vmatpush2.xpose.msra.mxu0 0.0
    %886 = vmatprep.subr.mxu0 0.0
    %887 = vmatpush2.xpose.msra.mxu0 0.0
    %888 = vmatprep.subr.mxu0 0.0
    %889 = vmatpush2.xpose.msra.mxu0 0.0
    %890 = vmatprep.subr.mxu0 0.0
    %891 = vmatpush2.xpose.msra.mxu0 0.0
    %892 = vmatprep.subr.mxu0 0.0
    %893 = vmatpush2.xpose.msra.mxu0 0.0
    %894 = vmatprep.subr.mxu0 0.0
    %895 = vmatpush2.xpose.msra.mxu0 0.0
    %896 = vmatprep.subr.mxu0 0.0
    %897 = vmatpush2.xpose.msra.mxu0 0.0
    %898 = vmatprep.subr.mxu0 0.0
    %899 = vmatpush2.xpose.msra.mxu0 0.0
    %900 = vmatprep.subr.mxu0 0.0
    %901 = vmatpush2.xpose.msra.mxu0 0.0
    %902 = vmatprep.subr.mxu0 0.0
    %903 = vmatpush2.xpose.msra.mxu0 0.0
    %904 = vmatprep.subr.mxu0 0.0
    %905 = vmatpush2.xpose.msra.mxu0 0.0
    %906 = vmatprep.mubr.f32.mxu0 0.0
    %907 = vmatmul.mubr.f32.gmra.mxu0 %v837
    %v908 = vpop.f32.mrf.mxu0
    %v909 = vadd.f32 %v453, %v908
    %v910 = vpop.f32.mrf.mxu0
    %911 = vdwg.mxu0
    %v913 = vsel %vm42, %v164, 0
    %v916 = vsel %vm42, %v302, 0
    %918 = vmatprep.subr.mxu0 0.0
    %919 = vmatpush1.xpose.msra.mxu0 0.0
    %920 = vmatprep.subr.mxu0 0.0
    %921 = vmatpush1.xpose.msra.mxu0 0.0
    %922 = vmatprep.subr.mxu0 0.0
    %923 = vmatpush1.xpose.msra.mxu0 0.0
    %924 = vmatprep.subr.mxu0 0.0
    %925 = vmatpush1.xpose.msra.mxu0 0.0
    %926 = vmatprep.subr.mxu0 0.0
    %927 = vmatpush1.xpose.msra.mxu0 0.0
    %928 = vmatprep.subr.mxu0 0.0
    %929 = vmatpush1.xpose.msra.mxu0 0.0
    %930 = vmatprep.subr.mxu0 0.0
    %931 = vmatpush1.xpose.msra.mxu0 0.0
    %932 = vmatprep.subr.mxu0 0.0
    %933 = vmatpush1.xpose.msra.mxu0 0.0
    %934 = vmatprep.subr.mxu0 0.0
    %935 = vmatpush1.xpose.msra.mxu0 0.0
    %936 = vmatprep.subr.mxu0 0.0
    %937 = vmatpush1.xpose.msra.mxu0 0.0
    %938 = vmatprep.subr.mxu0 0.0
    %939 = vmatpush1.xpose.msra.mxu0 0.0
    %940 = vmatprep.subr.mxu0 0.0
    %941 = vmatpush1.xpose.msra.mxu0 0.0
    %942 = vmatprep.subr.mxu0 0.0
    %943 = vmatpush1.xpose.msra.mxu0 0.0
    %944 = vmatprep.subr.mxu0 0.0
    %945 = vmatpush1.xpose.msra.mxu0 0.0
    %946 = vmatprep.subr.mxu0 0.0
    %947 = vmatpush1.xpose.msra.mxu0 0.0
    %948 = vmatprep.subr.mxu0 0.0
    %949 = vmatpush1.xpose.msra.mxu0 %v916
    %950 = vmatprep.subr.mxu0 0.0
    %951 = vmatpush2.xpose.msra.mxu0 0.0
    %952 = vmatprep.subr.mxu0 0.0
    %953 = vmatpush2.xpose.msra.mxu0 0.0
    %954 = vmatprep.subr.mxu0 0.0
    %955 = vmatpush2.xpose.msra.mxu0 0.0
    %956 = vmatprep.subr.mxu0 0.0
    %957 = vmatpush2.xpose.msra.mxu0 0.0
    %958 = vmatprep.subr.mxu0 0.0
    %959 = vmatpush2.xpose.msra.mxu0 0.0
    %960 = vmatprep.subr.mxu0 0.0
    %961 = vmatpush2.xpose.msra.mxu0 0.0
    %962 = vmatprep.subr.mxu0 0.0
    %963 = vmatpush2.xpose.msra.mxu0 0.0
    %964 = vmatprep.subr.mxu0 0.0
    %965 = vmatpush2.xpose.msra.mxu0 0.0
    %966 = vmatprep.subr.mxu0 0.0
    %967 = vmatpush2.xpose.msra.mxu0 0.0
    %968 = vmatprep.subr.mxu0 0.0
    %969 = vmatpush2.xpose.msra.mxu0 0.0
    %970 = vmatprep.subr.mxu0 0.0
    %971 = vmatpush2.xpose.msra.mxu0 0.0
    %972 = vmatprep.subr.mxu0 0.0
    %973 = vmatpush2.xpose.msra.mxu0 0.0
    %974 = vmatprep.subr.mxu0 0.0
    %975 = vmatpush2.xpose.msra.mxu0 0.0
    %976 = vmatprep.subr.mxu0 0.0
    %977 = vmatpush2.xpose.msra.mxu0 0.0
    %978 = vmatprep.subr.mxu0 0.0
    %979 = vmatpush2.xpose.msra.mxu0 0.0
    %980 = vmatprep.subr.mxu0 0.0
    %981 = vmatpush2.xpose.msra.mxu0 0.0
    %982 = vmatprep.mubr.f32.mxu0 0.0
    %983 = vmatmul.mubr.f32.gmra.mxu0 %v913
    %v984 = vpop.f32.mrf.mxu0
    %v985 = vadd.f32 %v454, %v984
    %v986 = vpop.f32.mrf.mxu0
    %987 = vdwg.mxu0
    %v989 = vsel %vm42, %v169, 0
    %v992 = vsel %vm42, %v307, 0
    %994 = vmatprep.subr.mxu0 0.0
    %995 = vmatpush1.xpose.msra.mxu0 0.0
    %996 = vmatprep.subr.mxu0 0.0
    %997 = vmatpush1.xpose.msra.mxu0 0.0
    %998 = vmatprep.subr.mxu0 0.0
    %999 = vmatpush1.xpose.msra.mxu0 0.0
    %1000 = vmatprep.subr.mxu0 0.0
    %1001 = vmatpush1.xpose.msra.mxu0 0.0
    %1002 = vmatprep.subr.mxu0 0.0
    %1003 = vmatpush1.xpose.msra.mxu0 0.0
    %1004 = vmatprep.subr.mxu0 0.0
    %1005 = vmatpush1.xpose.msra.mxu0 0.0
    %1006 = vmatprep.subr.mxu0 0.0
    %1007 = vmatpush1.xpose.msra.mxu0 0.0
    %1008 = vmatprep.subr.mxu0 0.0
    %1009 = vmatpush1.xpose.msra.mxu0 0.0
    %1010 = vmatprep.subr.mxu0 0.0
    %1011 = vmatpush1.xpose.msra.mxu0 0.0
    %1012 = vmatprep.subr.mxu0 0.0
    %1013 = vmatpush1.xpose.msra.mxu0 0.0
    %1014 = vmatprep.subr.mxu0 0.0
    %1015 = vmatpush1.xpose.msra.mxu0 0.0
    %1016 = vmatprep.subr.mxu0 0.0
    %1017 = vmatpush1.xpose.msra.mxu0 0.0
    %1018 = vmatprep.subr.mxu0 0.0
    %1019 = vmatpush1.xpose.msra.mxu0 0.0
    %1020 = vmatprep.subr.mxu0 0.0
    %1021 = vmatpush1.xpose.msra.mxu0 0.0
    %1022 = vmatprep.subr.mxu0 0.0
    %1023 = vmatpush1.xpose.msra.mxu0 0.0
    %1024 = vmatprep.subr.mxu0 0.0
    %1025 = vmatpush1.xpose.msra.mxu0 %v992
    %1026 = vmatprep.subr.mxu0 0.0
    %1027 = vmatpush2.xpose.msra.mxu0 0.0
    %1028 = vmatprep.subr.mxu0 0.0
    %1029 = vmatpush2.xpose.msra.mxu0 0.0
    %1030 = vmatprep.subr.mxu0 0.0
    %1031 = vmatpush2.xpose.msra.mxu0 0.0
    %1032 = vmatprep.subr.mxu0 0.0
    %1033 = vmatpush2.xpose.msra.mxu0 0.0
    %1034 = vmatprep.subr.mxu0 0.0
    %1035 = vmatpush2.xpose.msra.mxu0 0.0
    %1036 = vmatprep.subr.mxu0 0.0
    %1037 = vmatpush2.xpose.msra.mxu0 0.0
    %1038 = vmatprep.subr.mxu0 0.0
    %1039 = vmatpush2.xpose.msra.mxu0 0.0
    %1040 = vmatprep.subr.mxu0 0.0
    %1041 = vmatpush2.xpose.msra.mxu0 0.0
    %1042 = vmatprep.subr.mxu0 0.0
    %1043 = vmatpush2.xpose.msra.mxu0 0.0
    %1044 = vmatprep.subr.mxu0 0.0
    %1045 = vmatpush2.xpose.msra.mxu0 0.0
    %1046 = vmatprep.subr.mxu0 0.0
    %1047 = vmatpush2.xpose.msra.mxu0 0.0
    %1048 = vmatprep.subr.mxu0 0.0
    %1049 = vmatpush2.xpose.msra.mxu0 0.0
    %1050 = vmatprep.subr.mxu0 0.0
    %1051 = vmatpush2.xpose.msra.mxu0 0.0
    %1052 = vmatprep.subr.mxu0 0.0
    %1053 = vmatpush2.xpose.msra.mxu0 0.0
    %1054 = vmatprep.subr.mxu0 0.0
    %1055 = vmatpush2.xpose.msra.mxu0 0.0
    %1056 = vmatprep.subr.mxu0 0.0
    %1057 = vmatpush2.xpose.msra.mxu0 0.0
    %1058 = vmatprep.mubr.f32.mxu0 0.0
    %1059 = vmatmul.mubr.f32.gmra.mxu0 %v989
    %v1060 = vpop.f32.mrf.mxu0
    %v1061 = vadd.f32 %v455, %v1060
    %v1062 = vpop.f32.mrf.mxu0
    %1063 = vdwg.mxu0
    %v1064 = vsel %vm42, %v529, -inf
    %1065 = vmax.xlane.f32.xlu0 %v1064
    %v1066 = vpop.xlane.xlu0 %1065
    %v1067 = vsel %vm42, %v605, -inf
    %1068 = vmax.xlane.f32.xlu0 %v1067
    %v1069 = vpop.xlane.xlu0 %1068
    %v1070 = vsel %vm42, %v681, -inf
    %1071 = vmax.xlane.f32.xlu0 %v1070
    %v1072 = vpop.xlane.xlu0 %1071
    %v1073 = vsel %vm42, %v757, -inf
    %1074 = vmax.xlane.f32.xlu0 %v1073
    %v1075 = vpop.xlane.xlu0 %1074
    %v1076 = vsel %vm42, %v833, -inf
    %1077 = vmax.xlane.f32.xlu0 %v1076
    %v1078 = vpop.xlane.xlu0 %1077
    %v1079 = vsel %vm42, %v909, -inf
    %1080 = vmax.xlane.f32.xlu0 %v1079
    %v1081 = vpop.xlane.xlu0 %1080
    %v1082 = vsel %vm42, %v985, -inf
    %1083 = vmax.xlane.f32.xlu0 %v1082
    %v1084 = vpop.xlane.xlu0 %1083
    %v1085 = vsel %vm42, %v1061, -inf
    %1086 = vmax.xlane.f32.xlu0 %v1085
    %v1087 = vpop.xlane.xlu0 %1086
    %v1088 = vsub.f32 %v529, %v1066
    %v1089 = vsub.f32 %v605, %v1069
    %v1090 = vsub.f32 %v681, %v1072
    %v1091 = vsub.f32 %v757, %v1075
    %v1092 = vsub.f32 %v833, %v1078
    %v1093 = vsub.f32 %v909, %v1081
    %v1094 = vsub.f32 %v985, %v1084
    %v1095 = vsub.f32 %v1061, %v1087
    %v1096 = vmul.f32 %v1088, 1.442695
    %v1097 = vpow.pop %v1096
    %v1098 = vmul.f32 %v1089, 1.442695
    %v1099 = vpow.pop %v1098
    %v1100 = vmul.f32 %v1090, 1.442695
    %v1101 = vpow.pop %v1100
    %v1102 = vmul.f32 %v1091, 1.442695
    %v1103 = vpow.pop %v1102
    %v1104 = vmul.f32 %v1092, 1.442695
    %v1105 = vpow.pop %v1104
    %v1106 = vmul.f32 %v1093, 1.442695
    %v1107 = vpow.pop %v1106
    %v1108 = vmul.f32 %v1094, 1.442695
    %v1109 = vpow.pop %v1108
    %v1110 = vmul.f32 %v1095, 1.442695
    %v1111 = vpow.pop %v1110
    %v1112 = vsel %vm42, %v1097, 0.0
    %1113 = vadd.xlane.f32.xlu0 %v1112
    %v1114 = vpop.xlane.xlu0 %1113
    %v1115 = vsel %vm42, %v1099, 0.0
    %1116 = vadd.xlane.f32.xlu0 %v1115
    %v1117 = vpop.xlane.xlu0 %1116
    %v1118 = vsel %vm42, %v1101, 0.0
    %1119 = vadd.xlane.f32.xlu0 %v1118
    %v1120 = vpop.xlane.xlu0 %1119
    %v1121 = vsel %vm42, %v1103, 0.0
    %1122 = vadd.xlane.f32.xlu0 %v1121
    %v1123 = vpop.xlane.xlu0 %1122
    %v1124 = vsel %vm42, %v1105, 0.0
    %1125 = vadd.xlane.f32.xlu0 %v1124
    %v1126 = vpop.xlane.xlu0 %1125
    %v1127 = vsel %vm42, %v1107, 0.0
    %1128 = vadd.xlane.f32.xlu0 %v1127
    %v1129 = vpop.xlane.xlu0 %1128
    %v1130 = vsel %vm42, %v1109, 0.0
    %1131 = vadd.xlane.f32.xlu0 %v1130
    %v1132 = vpop.xlane.xlu0 %1131
    %v1133 = vsel %vm42, %v1111, 0.0
    %1134 = vadd.xlane.f32.xlu0 %v1133
    %v1135 = vpop.xlane.xlu0 %1134
    %v1136 = vrcp.pop %v1114
    %v1137 = vrcp.pop %v1117
    %v1138 = vrcp.pop %v1120
    %v1139 = vrcp.pop %v1123
    %v1140 = vrcp.pop %v1126
    %v1141 = vrcp.pop %v1129
    %v1142 = vrcp.pop %v1132
    %v1143 = vrcp.pop %v1135
    %v1144 = vmul.f32 %v1097, %v1136
    %v1145 = vmul.f32 %v1099, %v1137
    %v1146 = vmul.f32 %v1101, %v1138
    %v1147 = vmul.f32 %v1103, %v1139
    %v1148 = vmul.f32 %v1105, %v1140
    %v1149 = vmul.f32 %v1107, %v1141
    %v1150 = vmul.f32 %v1109, %v1142
    %v1151 = vmul.f32 %v1111, %v1143
    %v1153 = vsel %vm42, %v1144, 0
    %1155 = vmatprep.subr.mxu0 0.0
    %1156 = vmatpush1.msra.mxu0 0.0
    %1157 = vmatprep.subr.mxu0 0.0
    %1158 = vmatpush1.msra.mxu0 0.0
    %1159 = vmatprep.subr.mxu0 0.0
    %1160 = vmatpush1.msra.mxu0 0.0
    %1161 = vmatprep.subr.mxu0 0.0
    %1162 = vmatpush1.msra.mxu0 0.0
    %1163 = vmatprep.subr.mxu0 0.0
    %1164 = vmatpush1.msra.mxu0 0.0
    %1165 = vmatprep.subr.mxu0 0.0
    %1166 = vmatpush1.msra.mxu0 0.0
    %1167 = vmatprep.subr.mxu0 0.0
    %1168 = vmatpush1.msra.mxu0 0.0
    %1169 = vmatprep.subr.mxu0 0.0
    %1170 = vmatpush1.msra.mxu0 0.0
    %1171 = vmatprep.subr.mxu0 0.0
    %1172 = vmatpush1.msra.mxu0 0.0
    %1173 = vmatprep.subr.mxu0 0.0
    %1174 = vmatpush1.msra.mxu0 0.0
    %1175 = vmatprep.subr.mxu0 0.0
    %1176 = vmatpush1.msra.mxu0 0.0
    %1177 = vmatprep.subr.mxu0 0.0
    %1178 = vmatpush1.msra.mxu0 0.0
    %1179 = vmatprep.subr.mxu0 0.0
    %1180 = vmatpush1.msra.mxu0 0.0
    %1181 = vmatprep.subr.mxu0 0.0
    %1182 = vmatpush1.msra.mxu0 0.0
    %1183 = vmatprep.subr.mxu0 0.0
    %1184 = vmatpush1.msra.mxu0 0.0
    %1185 = vmatprep.subr.mxu0 0.0
    %1186 = vmatpush1.msra.mxu0 %v410
    %1187 = vmatprep.subr.mxu0 0.0
    %1188 = vmatpush2.msra.mxu0 0.0
    %1189 = vmatprep.subr.mxu0 0.0
    %1190 = vmatpush2.msra.mxu0 0.0
    %1191 = vmatprep.subr.mxu0 0.0
    %1192 = vmatpush2.msra.mxu0 0.0
    %1193 = vmatprep.subr.mxu0 0.0
    %1194 = vmatpush2.msra.mxu0 0.0
    %1195 = vmatprep.subr.mxu0 0.0
    %1196 = vmatpush2.msra.mxu0 0.0
    %1197 = vmatprep.subr.mxu0 0.0
    %1198 = vmatpush2.msra.mxu0 0.0
    %1199 = vmatprep.subr.mxu0 0.0
    %1200 = vmatpush2.msra.mxu0 0.0
    %1201 = vmatprep.subr.mxu0 0.0
    %1202 = vmatpush2.msra.mxu0 0.0
    %1203 = vmatprep.subr.mxu0 0.0
    %1204 = vmatpush2.msra.mxu0 0.0
    %1205 = vmatprep.subr.mxu0 0.0
    %1206 = vmatpush2.msra.mxu0 0.0
    %1207 = vmatprep.subr.mxu0 0.0
    %1208 = vmatpush2.msra.mxu0 0.0
    %1209 = vmatprep.subr.mxu0 0.0
    %1210 = vmatpush2.msra.mxu0 0.0
    %1211 = vmatprep.subr.mxu0 0.0
    %1212 = vmatpush2.msra.mxu0 0.0
    %1213 = vmatprep.subr.mxu0 0.0
    %1214 = vmatpush2.msra.mxu0 0.0
    %1215 = vmatprep.subr.mxu0 0.0
    %1216 = vmatpush2.msra.mxu0 0.0
    %1217 = vmatprep.subr.mxu0 0.0
    %1218 = vmatpush2.msra.mxu0 0.0
    %1219 = vmatprep.mubr.f32.mxu0 0.0
    %1220 = vmatmul.mubr.f32.gmra.mxu0 %v1153
    %v1221 = vpop.f32.mrf.mxu0
    %v1222 = vadd.f32 0.0, %v1221
    %v1223 = vpop.f32.mrf.mxu0
    %1224 = vdwg.mxu0
    %v1226 = vsel %vm42, %v1145, 0
    %1228 = vmatprep.subr.mxu0 0.0
    %1229 = vmatpush1.msra.mxu0 0.0
    %1230 = vmatprep.subr.mxu0 0.0
    %1231 = vmatpush1.msra.mxu0 0.0
    %1232 = vmatprep.subr.mxu0 0.0
    %1233 = vmatpush1.msra.mxu0 0.0
    %1234 = vmatprep.subr.mxu0 0.0
    %1235 = vmatpush1.msra.mxu0 0.0
    %1236 = vmatprep.subr.mxu0 0.0
    %1237 = vmatpush1.msra.mxu0 0.0
    %1238 = vmatprep.subr.mxu0 0.0
    %1239 = vmatpush1.msra.mxu0 0.0
    %1240 = vmatprep.subr.mxu0 0.0
    %1241 = vmatpush1.msra.mxu0 0.0
    %1242 = vmatprep.subr.mxu0 0.0
    %1243 = vmatpush1.msra.mxu0 0.0
    %1244 = vmatprep.subr.mxu0 0.0
    %1245 = vmatpush1.msra.mxu0 0.0
    %1246 = vmatprep.subr.mxu0 0.0
    %1247 = vmatpush1.msra.mxu0 0.0
    %1248 = vmatprep.subr.mxu0 0.0
    %1249 = vmatpush1.msra.mxu0 0.0
    %1250 = vmatprep.subr.mxu0 0.0
    %1251 = vmatpush1.msra.mxu0 0.0
    %1252 = vmatprep.subr.mxu0 0.0
    %1253 = vmatpush1.msra.mxu0 0.0
    %1254 = vmatprep.subr.mxu0 0.0
    %1255 = vmatpush1.msra.mxu0 0.0
    %1256 = vmatprep.subr.mxu0 0.0
    %1257 = vmatpush1.msra.mxu0 0.0
    %1258 = vmatprep.subr.mxu0 0.0
    %1259 = vmatpush1.msra.mxu0 %v415
    %1260 = vmatprep.subr.mxu0 0.0
    %1261 = vmatpush2.msra.mxu0 0.0
    %1262 = vmatprep.subr.mxu0 0.0
    %1263 = vmatpush2.msra.mxu0 0.0
    %1264 = vmatprep.subr.mxu0 0.0
    %1265 = vmatpush2.msra.mxu0 0.0
    %1266 = vmatprep.subr.mxu0 0.0
    %1267 = vmatpush2.msra.mxu0 0.0
    %1268 = vmatprep.subr.mxu0 0.0
    %1269 = vmatpush2.msra.mxu0 0.0
    %1270 = vmatprep.subr.mxu0 0.0
    %1271 = vmatpush2.msra.mxu0 0.0
    %1272 = vmatprep.subr.mxu0 0.0
    %1273 = vmatpush2.msra.mxu0 0.0
    %1274 = vmatprep.subr.mxu0 0.0
    %1275 = vmatpush2.msra.mxu0 0.0
    %1276 = vmatprep.subr.mxu0 0.0
    %1277 = vmatpush2.msra.mxu0 0.0
    %1278 = vmatprep.subr.mxu0 0.0
    %1279 = vmatpush2.msra.mxu0 0.0
    %1280 = vmatprep.subr.mxu0 0.0
    %1281 = vmatpush2.msra.mxu0 0.0
    %1282 = vmatprep.subr.mxu0 0.0
    %1283 = vmatpush2.msra.mxu0 0.0
    %1284 = vmatprep.subr.mxu0 0.0
    %1285 = vmatpush2.msra.mxu0 0.0
    %1286 = vmatprep.subr.mxu0 0.0
    %1287 = vmatpush2.msra.mxu0 0.0
    %1288 = vmatprep.subr.mxu0 0.0
    %1289 = vmatpush2.msra.mxu0 0.0
    %1290 = vmatprep.subr.mxu0 0.0
    %1291 = vmatpush2.msra.mxu0 0.0
    %1292 = vmatprep.mubr.f32.mxu0 0.0
    %1293 = vmatmul.mubr.f32.gmra.mxu0 %v1226
    %v1294 = vpop.f32.mrf.mxu0
    %v1295 = vadd.f32 0.0, %v1294
    %v1296 = vpop.f32.mrf.mxu0
    %1297 = vdwg.mxu0
    %v1299 = vsel %vm42, %v1146, 0
    %1301 = vmatprep.subr.mxu0 0.0
    %1302 = vmatpush1.msra.mxu0 0.0
    %1303 = vmatprep.subr.mxu0 0.0
    %1304 = vmatpush1.msra.mxu0 0.0
    %1305 = vmatprep.subr.mxu0 0.0
    %1306 = vmatpush1.msra.mxu0 0.0
    %1307 = vmatprep.subr.mxu0 0.0
    %1308 = vmatpush1.msra.mxu0 0.0
    %1309 = vmatprep.subr.mxu0 0.0
    %1310 = vmatpush1.msra.mxu0 0.0
    %1311 = vmatprep.subr.mxu0 0.0
    %1312 = vmatpush1.msra.mxu0 0.0
    %1313 = vmatprep.subr.mxu0 0.0
    %1314 = vmatpush1.msra.mxu0 0.0
    %1315 = vmatprep.subr.mxu0 0.0
    %1316 = vmatpush1.msra.mxu0 0.0
    %1317 = vmatprep.subr.mxu0 0.0
    %1318 = vmatpush1.msra.mxu0 0.0
    %1319 = vmatprep.subr.mxu0 0.0
    %1320 = vmatpush1.msra.mxu0 0.0
    %1321 = vmatprep.subr.mxu0 0.0
    %1322 = vmatpush1.msra.mxu0 0.0
    %1323 = vmatprep.subr.mxu0 0.0
    %1324 = vmatpush1.msra.mxu0 0.0
    %1325 = vmatprep.subr.mxu0 0.0
    %1326 = vmatpush1.msra.mxu0 0.0
    %1327 = vmatprep.subr.mxu0 0.0
    %1328 = vmatpush1.msra.mxu0 0.0
    %1329 = vmatprep.subr.mxu0 0.0
    %1330 = vmatpush1.msra.mxu0 0.0
    %1331 = vmatprep.subr.mxu0 0.0
    %1332 = vmatpush1.msra.mxu0 %v420
    %1333 = vmatprep.subr.mxu0 0.0
    %1334 = vmatpush2.msra.mxu0 0.0
    %1335 = vmatprep.subr.mxu0 0.0
    %1336 = vmatpush2.msra.mxu0 0.0
    %1337 = vmatprep.subr.mxu0 0.0
    %1338 = vmatpush2.msra.mxu0 0.0
    %1339 = vmatprep.subr.mxu0 0.0
    %1340 = vmatpush2.msra.mxu0 0.0
    %1341 = vmatprep.subr.mxu0 0.0
    %1342 = vmatpush2.msra.mxu0 0.0
    %1343 = vmatprep.subr.mxu0 0.0
    %1344 = vmatpush2.msra.mxu0 0.0
    %1345 = vmatprep.subr.mxu0 0.0
    %1346 = vmatpush2.msra.mxu0 0.0
    %1347 = vmatprep.subr.mxu0 0.0
    %1348 = vmatpush2.msra.mxu0 0.0
    %1349 = vmatprep.subr.mxu0 0.0
    %1350 = vmatpush2.msra.mxu0 0.0
    %1351 = vmatprep.subr.mxu0 0.0
    %1352 = vmatpush2.msra.mxu0 0.0
    %1353 = vmatprep.subr.mxu0 0.0
    %1354 = vmatpush2.msra.mxu0 0.0
    %1355 = vmatprep.subr.mxu0 0.0
    %1356 = vmatpush2.msra.mxu0 0.0
    %1357 = vmatprep.subr.mxu0 0.0
    %1358 = vmatpush2.msra.mxu0 0.0
    %1359 = vmatprep.subr.mxu0 0.0
    %1360 = vmatpush2.msra.mxu0 0.0
    %1361 = vmatprep.subr.mxu0 0.0
    %1362 = vmatpush2.msra.mxu0 0.0
    %1363 = vmatprep.subr.mxu0 0.0
    %1364 = vmatpush2.msra.mxu0 0.0
    %1365 = vmatprep.mubr.f32.mxu0 0.0
    %1366 = vmatmul.mubr.f32.gmra.mxu0 %v1299
    %v1367 = vpop.f32.mrf.mxu0
    %v1368 = vadd.f32 0.0, %v1367
    %v1369 = vpop.f32.mrf.mxu0
    %1370 = vdwg.mxu0
    %v1372 = vsel %vm42, %v1147, 0
    %1374 = vmatprep.subr.mxu0 0.0
    %1375 = vmatpush1.msra.mxu0 0.0
    %1376 = vmatprep.subr.mxu0 0.0
    %1377 = vmatpush1.msra.mxu0 0.0
    %1378 = vmatprep.subr.mxu0 0.0
    %1379 = vmatpush1.msra.mxu0 0.0
    %1380 = vmatprep.subr.mxu0 0.0
    %1381 = vmatpush1.msra.mxu0 0.0
    %1382 = vmatprep.subr.mxu0 0.0
    %1383 = vmatpush1.msra.mxu0 0.0
    %1384 = vmatprep.subr.mxu0 0.0
    %1385 = vmatpush1.msra.mxu0 0.0
    %1386 = vmatprep.subr.mxu0 0.0
    %1387 = vmatpush1.msra.mxu0 0.0
    %1388 = vmatprep.subr.mxu0 0.0
    %1389 = vmatpush1.msra.mxu0 0.0
    %1390 = vmatprep.subr.mxu0 0.0
    %1391 = vmatpush1.msra.mxu0 0.0
    %1392 = vmatprep.subr.mxu0 0.0
    %1393 = vmatpush1.msra.mxu0 0.0
    %1394 = vmatprep.subr.mxu0 0.0
    %1395 = vmatpush1.msra.mxu0 0.0
    %1396 = vmatprep.subr.mxu0 0.0
    %1397 = vmatpush1.msra.mxu0 0.0
    %1398 = vmatprep.subr.mxu0 0.0
    %1399 = vmatpush1.msra.mxu0 0.0
    %1400 = vmatprep.subr.mxu0 0.0
    %1401 = vmatpush1.msra.mxu0 0.0
    %1402 = vmatprep.subr.mxu0 0.0
    %1403 = vmatpush1.msra.mxu0 0.0
    %1404 = vmatprep.subr.mxu0 0.0
    %1405 = vmatpush1.msra.mxu0 %v425
    %1406 = vmatprep.subr.mxu0 0.0
    %1407 = vmatpush2.msra.mxu0 0.0
    %1408 = vmatprep.subr.mxu0 0.0
    %1409 = vmatpush2.msra.mxu0 0.0
    %1410 = vmatprep.subr.mxu0 0.0
    %1411 = vmatpush2.msra.mxu0 0.0
    %1412 = vmatprep.subr.mxu0 0.0
    %1413 = vmatpush2.msra.mxu0 0.0
    %1414 = vmatprep.subr.mxu0 0.0
    %1415 = vmatpush2.msra.mxu0 0.0
    %1416 = vmatprep.subr.mxu0 0.0
    %1417 = vmatpush2.msra.mxu0 0.0
    %1418 = vmatprep.subr.mxu0 0.0
    %1419 = vmatpush2.msra.mxu0 0.0
    %1420 = vmatprep.subr.mxu0 0.0
    %1421 = vmatpush2.msra.mxu0 0.0
    %1422 = vmatprep.subr.mxu0 0.0
    %1423 = vmatpush2.msra.mxu0 0.0
    %1424 = vmatprep.subr.mxu0 0.0
    %1425 = vmatpush2.msra.mxu0 0.0
    %1426 = vmatprep.subr.mxu0 0.0
    %1427 = vmatpush2.msra.mxu0 0.0
    %1428 = vmatprep.subr.mxu0 0.0
    %1429 = vmatpush2.msra.mxu0 0.0
    %1430 = vmatprep.subr.mxu0 0.0
    %1431 = vmatpush2.msra.mxu0 0.0
    %1432 = vmatprep.subr.mxu0 0.0
    %1433 = vmatpush2.msra.mxu0 0.0
    %1434 = vmatprep.subr.mxu0 0.0
    %1435 = vmatpush2.msra.mxu0 0.0
    %1436 = vmatprep.subr.mxu0 0.0
    %1437 = vmatpush2.msra.mxu0 0.0
    %1438 = vmatprep.mubr.f32.mxu0 0.0
    %1439 = vmatmul.mubr.f32.gmra.mxu0 %v1372
    %v1440 = vpop.f32.mrf.mxu0
    %v1441 = vadd.f32 0.0, %v1440
    %v1442 = vpop.f32.mrf.mxu0
    %1443 = vdwg.mxu0
    %v1445 = vsel %vm42, %v1148, 0
    %1447 = vmatprep.subr.mxu0 0.0
    %1448 = vmatpush1.msra.mxu0 0.0
    %1449 = vmatprep.subr.mxu0 0.0
    %1450 = vmatpush1.msra.mxu0 0.0
    %1451 = vmatprep.subr.mxu0 0.0
    %1452 = vmatpush1.msra.mxu0 0.0
    %1453 = vmatprep.subr.mxu0 0.0
    %1454 = vmatpush1.msra.mxu0 0.0
    %1455 = vmatprep.subr.mxu0 0.0
    %1456 = vmatpush1.msra.mxu0 0.0
    %1457 = vmatprep.subr.mxu0 0.0
    %1458 = vmatpush1.msra.mxu0 0.0
    %1459 = vmatprep.subr.mxu0 0.0
    %1460 = vmatpush1.msra.mxu0 0.0
    %1461 = vmatprep.subr.mxu0 0.0
    %1462 = vmatpush1.msra.mxu0 0.0
    %1463 = vmatprep.subr.mxu0 0.0
    %1464 = vmatpush1.msra.mxu0 0.0
    %1465 = vmatprep.subr.mxu0 0.0
    %1466 = vmatpush1.msra.mxu0 0.0
    %1467 = vmatprep.subr.mxu0 0.0
    %1468 = vmatpush1.msra.mxu0 0.0
    %1469 = vmatprep.subr.mxu0 0.0
    %1470 = vmatpush1.msra.mxu0 0.0
    %1471 = vmatprep.subr.mxu0 0.0
    %1472 = vmatpush1.msra.mxu0 0.0
    %1473 = vmatprep.subr.mxu0 0.0
    %1474 = vmatpush1.msra.mxu0 0.0
    %1475 = vmatprep.subr.mxu0 0.0
    %1476 = vmatpush1.msra.mxu0 0.0
    %1477 = vmatprep.subr.mxu0 0.0
    %1478 = vmatpush1.msra.mxu0 %v430
    %1479 = vmatprep.subr.mxu0 0.0
    %1480 = vmatpush2.msra.mxu0 0.0
    %1481 = vmatprep.subr.mxu0 0.0
    %1482 = vmatpush2.msra.mxu0 0.0
    %1483 = vmatprep.subr.mxu0 0.0
    %1484 = vmatpush2.msra.mxu0 0.0
    %1485 = vmatprep.subr.mxu0 0.0
    %1486 = vmatpush2.msra.mxu0 0.0
    %1487 = vmatprep.subr.mxu0 0.0
    %1488 = vmatpush2.msra.mxu0 0.0
    %1489 = vmatprep.subr.mxu0 0.0
    %1490 = vmatpush2.msra.mxu0 0.0
    %1491 = vmatprep.subr.mxu0 0.0
    %1492 = vmatpush2.msra.mxu0 0.0
    %1493 = vmatprep.subr.mxu0 0.0
    %1494 = vmatpush2.msra.mxu0 0.0
    %1495 = vmatprep.subr.mxu0 0.0
    %1496 = vmatpush2.msra.mxu0 0.0
    %1497 = vmatprep.subr.mxu0 0.0
    %1498 = vmatpush2.msra.mxu0 0.0
    %1499 = vmatprep.subr.mxu0 0.0
    %1500 = vmatpush2.msra.mxu0 0.0
    %1501 = vmatprep.subr.mxu0 0.0
    %1502 = vmatpush2.msra.mxu0 0.0
    %1503 = vmatprep.subr.mxu0 0.0
    %1504 = vmatpush2.msra.mxu0 0.0
    %1505 = vmatprep.subr.mxu0 0.0
    %1506 = vmatpush2.msra.mxu0 0.0
    %1507 = vmatprep.subr.mxu0 0.0
    %1508 = vmatpush2.msra.mxu0 0.0
    %1509 = vmatprep.subr.mxu0 0.0
    %1510 = vmatpush2.msra.mxu0 0.0
    %1511 = vmatprep.mubr.f32.mxu0 0.0
    %1512 = vmatmul.mubr.f32.gmra.mxu0 %v1445
    %v1513 = vpop.f32.mrf.mxu0
    %v1514 = vadd.f32 0.0, %v1513
    %v1515 = vpop.f32.mrf.mxu0
    %1516 = vdwg.mxu0
    %v1518 = vsel %vm42, %v1149, 0
    %1520 = vmatprep.subr.mxu0 0.0
    %1521 = vmatpush1.msra.mxu0 0.0
    %1522 = vmatprep.subr.mxu0 0.0
    %1523 = vmatpush1.msra.mxu0 0.0
    %1524 = vmatprep.subr.mxu0 0.0
    %1525 = vmatpush1.msra.mxu0 0.0
    %1526 = vmatprep.subr.mxu0 0.0
    %1527 = vmatpush1.msra.mxu0 0.0
    %1528 = vmatprep.subr.mxu0 0.0
    %1529 = vmatpush1.msra.mxu0 0.0
    %1530 = vmatprep.subr.mxu0 0.0
    %1531 = vmatpush1.msra.mxu0 0.0
    %1532 = vmatprep.subr.mxu0 0.0
    %1533 = vmatpush1.msra.mxu0 0.0
    %1534 = vmatprep.subr.mxu0 0.0
    %1535 = vmatpush1.msra.mxu0 0.0
    %1536 = vmatprep.subr.mxu0 0.0
    %1537 = vmatpush1.msra.mxu0 0.0
    %1538 = vmatprep.subr.mxu0 0.0
    %1539 = vmatpush1.msra.mxu0 0.0
    %1540 = vmatprep.subr.mxu0 0.0
    %1541 = vmatpush1.msra.mxu0 0.0
    %1542 = vmatprep.subr.mxu0 0.0
    %1543 = vmatpush1.msra.mxu0 0.0
    %1544 = vmatprep.subr.mxu0 0.0
    %1545 = vmatpush1.msra.mxu0 0.0
    %1546 = vmatprep.subr.mxu0 0.0
    %1547 = vmatpush1.msra.mxu0 0.0
    %1548 = vmatprep.subr.mxu0 0.0
    %1549 = vmatpush1.msra.mxu0 0.0
    %1550 = vmatprep.subr.mxu0 0.0
    %1551 = vmatpush1.msra.mxu0 %v435
    %1552 = vmatprep.subr.mxu0 0.0
    %1553 = vmatpush2.msra.mxu0 0.0
    %1554 = vmatprep.subr.mxu0 0.0
    %1555 = vmatpush2.msra.mxu0 0.0
    %1556 = vmatprep.subr.mxu0 0.0
    %1557 = vmatpush2.msra.mxu0 0.0
    %1558 = vmatprep.subr.mxu0 0.0
    %1559 = vmatpush2.msra.mxu0 0.0
    %1560 = vmatprep.subr.mxu0 0.0
    %1561 = vmatpush2.msra.mxu0 0.0
    %1562 = vmatprep.subr.mxu0 0.0
    %1563 = vmatpush2.msra.mxu0 0.0
    %1564 = vmatprep.subr.mxu0 0.0
    %1565 = vmatpush2.msra.mxu0 0.0
    %1566 = vmatprep.subr.mxu0 0.0
    %1567 = vmatpush2.msra.mxu0 0.0
    %1568 = vmatprep.subr.mxu0 0.0
    %1569 = vmatpush2.msra.mxu0 0.0
    %1570 = vmatprep.subr.mxu0 0.0
    %1571 = vmatpush2.msra.mxu0 0.0
    %1572 = vmatprep.subr.mxu0 0.0
    %1573 = vmatpush2.msra.mxu0 0.0
    %1574 = vmatprep.subr.mxu0 0.0
    %1575 = vmatpush2.msra.mxu0 0.0
    %1576 = vmatprep.subr.mxu0 0.0
    %1577 = vmatpush2.msra.mxu0 0.0
    %1578 = vmatprep.subr.mxu0 0.0
    %1579 = vmatpush2.msra.mxu0 0.0
    %1580 = vmatprep.subr.mxu0 0.0
    %1581 = vmatpush2.msra.mxu0 0.0
    %1582 = vmatprep.subr.mxu0 0.0
    %1583 = vmatpush2.msra.mxu0 0.0
    %1584 = vmatprep.mubr.f32.mxu0 0.0
    %1585 = vmatmul.mubr.f32.gmra.mxu0 %v1518
    %v1586 = vpop.f32.mrf.mxu0
    %v1587 = vadd.f32 0.0, %v1586
    %v1588 = vpop.f32.mrf.mxu0
    %1589 = vdwg.mxu0
    %v1591 = vsel %vm42, %v1150, 0
    %1593 = vmatprep.subr.mxu0 0.0
    %1594 = vmatpush1.msra.mxu0 0.0
    %1595 = vmatprep.subr.mxu0 0.0
    %1596 = vmatpush1.msra.mxu0 0.0
    %1597 = vmatprep.subr.mxu0 0.0
    %1598 = vmatpush1.msra.mxu0 0.0
    %1599 = vmatprep.subr.mxu0 0.0
    %1600 = vmatpush1.msra.mxu0 0.0
    %1601 = vmatprep.subr.mxu0 0.0
    %1602 = vmatpush1.msra.mxu0 0.0
    %1603 = vmatprep.subr.mxu0 0.0
    %1604 = vmatpush1.msra.mxu0 0.0
    %1605 = vmatprep.subr.mxu0 0.0
    %1606 = vmatpush1.msra.mxu0 0.0
    %1607 = vmatprep.subr.mxu0 0.0
    %1608 = vmatpush1.msra.mxu0 0.0
    %1609 = vmatprep.subr.mxu0 0.0
    %1610 = vmatpush1.msra.mxu0 0.0
    %1611 = vmatprep.subr.mxu0 0.0
    %1612 = vmatpush1.msra.mxu0 0.0
    %1613 = vmatprep.subr.mxu0 0.0
    %1614 = vmatpush1.msra.mxu0 0.0
    %1615 = vmatprep.subr.mxu0 0.0
    %1616 = vmatpush1.msra.mxu0 0.0
    %1617 = vmatprep.subr.mxu0 0.0
    %1618 = vmatpush1.msra.mxu0 0.0
    %1619 = vmatprep.subr.mxu0 0.0
    %1620 = vmatpush1.msra.mxu0 0.0
    %1621 = vmatprep.subr.mxu0 0.0
    %1622 = vmatpush1.msra.mxu0 0.0
    %1623 = vmatprep.subr.mxu0 0.0
    %1624 = vmatpush1.msra.mxu0 %v440
    %1625 = vmatprep.subr.mxu0 0.0
    %1626 = vmatpush2.msra.mxu0 0.0
    %1627 = vmatprep.subr.mxu0 0.0
    %1628 = vmatpush2.msra.mxu0 0.0
    %1629 = vmatprep.subr.mxu0 0.0
    %1630 = vmatpush2.msra.mxu0 0.0
    %1631 = vmatprep.subr.mxu0 0.0
    %1632 = vmatpush2.msra.mxu0 0.0
    %1633 = vmatprep.subr.mxu0 0.0
    %1634 = vmatpush2.msra.mxu0 0.0
    %1635 = vmatprep.subr.mxu0 0.0
    %1636 = vmatpush2.msra.mxu0 0.0
    %1637 = vmatprep.subr.mxu0 0.0
    %1638 = vmatpush2.msra.mxu0 0.0
    %1639 = vmatprep.subr.mxu0 0.0
    %1640 = vmatpush2.msra.mxu0 0.0
    %1641 = vmatprep.subr.mxu0 0.0
    %1642 = vmatpush2.msra.mxu0 0.0
    %1643 = vmatprep.subr.mxu0 0.0
    %1644 = vmatpush2.msra.mxu0 0.0
    %1645 = vmatprep.subr.mxu0 0.0
    %1646 = vmatpush2.msra.mxu0 0.0
    %1647 = vmatprep.subr.mxu0 0.0
    %1648 = vmatpush2.msra.mxu0 0.0
    %1649 = vmatprep.subr.mxu0 0.0
    %1650 = vmatpush2.msra.mxu0 0.0
    %1651 = vmatprep.subr.mxu0 0.0
    %1652 = vmatpush2.msra.mxu0 0.0
    %1653 = vmatprep.subr.mxu0 0.0
    %1654 = vmatpush2.msra.mxu0 0.0
    %1655 = vmatprep.subr.mxu0 0.0
    %1656 = vmatpush2.msra.mxu0 0.0
    %1657 = vmatprep.mubr.f32.mxu0 0.0
    %1658 = vmatmul.mubr.f32.gmra.mxu0 %v1591
    %v1659 = vpop.f32.mrf.mxu0
    %v1660 = vadd.f32 0.0, %v1659
    %v1661 = vpop.f32.mrf.mxu0
    %1662 = vdwg.mxu0
    %v1664 = vsel %vm42, %v1151, 0
    %1666 = vmatprep.subr.mxu0 0.0
    %1667 = vmatpush1.msra.mxu0 0.0
    %1668 = vmatprep.subr.mxu0 0.0
    %1669 = vmatpush1.msra.mxu0 0.0
    %1670 = vmatprep.subr.mxu0 0.0
    %1671 = vmatpush1.msra.mxu0 0.0
    %1672 = vmatprep.subr.mxu0 0.0
    %1673 = vmatpush1.msra.mxu0 0.0
    %1674 = vmatprep.subr.mxu0 0.0
    %1675 = vmatpush1.msra.mxu0 0.0
    %1676 = vmatprep.subr.mxu0 0.0
    %1677 = vmatpush1.msra.mxu0 0.0
    %1678 = vmatprep.subr.mxu0 0.0
    %1679 = vmatpush1.msra.mxu0 0.0
    %1680 = vmatprep.subr.mxu0 0.0
    %1681 = vmatpush1.msra.mxu0 0.0
    %1682 = vmatprep.subr.mxu0 0.0
    %1683 = vmatpush1.msra.mxu0 0.0
    %1684 = vmatprep.subr.mxu0 0.0
    %1685 = vmatpush1.msra.mxu0 0.0
    %1686 = vmatprep.subr.mxu0 0.0
    %1687 = vmatpush1.msra.mxu0 0.0
    %1688 = vmatprep.subr.mxu0 0.0
    %1689 = vmatpush1.msra.mxu0 0.0
    %1690 = vmatprep.subr.mxu0 0.0
    %1691 = vmatpush1.msra.mxu0 0.0
    %1692 = vmatprep.subr.mxu0 0.0
    %1693 = vmatpush1.msra.mxu0 0.0
    %1694 = vmatprep.subr.mxu0 0.0
    %1695 = vmatpush1.msra.mxu0 0.0
    %1696 = vmatprep.subr.mxu0 0.0
    %1697 = vmatpush1.msra.mxu0 %v445
    %1698 = vmatprep.subr.mxu0 0.0
    %1699 = vmatpush2.msra.mxu0 0.0
    %1700 = vmatprep.subr.mxu0 0.0
    %1701 = vmatpush2.msra.mxu0 0.0
    %1702 = vmatprep.subr.mxu0 0.0
    %1703 = vmatpush2.msra.mxu0 0.0
    %1704 = vmatprep.subr.mxu0 0.0
    %1705 = vmatpush2.msra.mxu0 0.0
    %1706 = vmatprep.subr.mxu0 0.0
    %1707 = vmatpush2.msra.mxu0 0.0
    %1708 = vmatprep.subr.mxu0 0.0
    %1709 = vmatpush2.msra.mxu0 0.0
    %1710 = vmatprep.subr.mxu0 0.0
    %1711 = vmatpush2.msra.mxu0 0.0
    %1712 = vmatprep.subr.mxu0 0.0
    %1713 = vmatpush2.msra.mxu0 0.0
    %1714 = vmatprep.subr.mxu0 0.0
    %1715 = vmatpush2.msra.mxu0 0.0
    %1716 = vmatprep.subr.mxu0 0.0
    %1717 = vmatpush2.msra.mxu0 0.0
    %1718 = vmatprep.subr.mxu0 0.0
    %1719 = vmatpush2.msra.mxu0 0.0
    %1720 = vmatprep.subr.mxu0 0.0
    %1721 = vmatpush2.msra.mxu0 0.0
    %1722 = vmatprep.subr.mxu0 0.0
    %1723 = vmatpush2.msra.mxu0 0.0
    %1724 = vmatprep.subr.mxu0 0.0
    %1725 = vmatpush2.msra.mxu0 0.0
    %1726 = vmatprep.subr.mxu0 0.0
    %1727 = vmatpush2.msra.mxu0 0.0
    %1728 = vmatprep.subr.mxu0 0.0
    %1729 = vmatpush2.msra.mxu0 0.0
    %1730 = vmatprep.mubr.f32.mxu0 0.0
    %1731 = vmatmul.mubr.f32.gmra.mxu0 %v1664
    %v1732 = vpop.f32.mrf.mxu0
    %v1733 = vadd.f32 0.0, %v1732
    %v1734 = vpop.f32.mrf.mxu0
    %1735 = vdwg.mxu0
    %v1736 = vld [vmem:[%s7] sm:$0xff]
    %v1737 = vld [vmem:[%s7 + $0x8] sm:$0xff]
    %v1738 = vld [vmem:[%s7 + $0x10] sm:$0xff]
    %v1739 = vld [vmem:[%s7 + $0x18] sm:$0xff]
    %v1740 = vld [vmem:[%s7 + $0x20] sm:$0xff]
    %v1741 = vld [vmem:[%s7 + $0x28] sm:$0xff]
    %v1742 = vld [vmem:[%s7 + $0x30] sm:$0xff]
    %v1743 = vld [vmem:[%s7 + $0x38] sm:$0xff]
    %v1745 = vsel %vm42, %v1222, 0
    %1747 = vmatprep.subr.mxu0 0.0
    %1748 = vmatpush1.msra.mxu0 0.0
    %1749 = vmatprep.subr.mxu0 0.0
    %1750 = vmatpush1.msra.mxu0 0.0
    %1751 = vmatprep.subr.mxu0 0.0
    %1752 = vmatpush1.msra.mxu0 0.0
    %1753 = vmatprep.subr.mxu0 0.0
    %1754 = vmatpush1.msra.mxu0 0.0
    %1755 = vmatprep.subr.mxu0 0.0
    %1756 = vmatpush1.msra.mxu0 0.0
    %1757 = vmatprep.subr.mxu0 0.0
    %1758 = vmatpush1.msra.mxu0 0.0
    %1759 = vmatprep.subr.mxu0 0.0
    %1760 = vmatpush1.msra.mxu0 0.0
    %1761 = vmatprep.subr.mxu0 0.0
    %1762 = vmatpush1.msra.mxu0 0.0
    %1763 = vmatprep.subr.mxu0 0.0
    %1764 = vmatpush1.msra.mxu0 0.0
    %1765 = vmatprep.subr.mxu0 0.0
    %1766 = vmatpush1.msra.mxu0 0.0
    %1767 = vmatprep.subr.mxu0 0.0
    %1768 = vmatpush1.msra.mxu0 0.0
    %1769 = vmatprep.subr.mxu0 0.0
    %1770 = vmatpush1.msra.mxu0 0.0
    %1771 = vmatprep.subr.mxu0 0.0
    %1772 = vmatpush1.msra.mxu0 0.0
    %1773 = vmatprep.subr.mxu0 0.0
    %1774 = vmatpush1.msra.mxu0 0.0
    %1775 = vmatprep.subr.mxu0 0.0
    %1776 = vmatpush1.msra.mxu0 0.0
    %1777 = vmatprep.subr.mxu0 0.0
    %1778 = vmatpush1.msra.mxu0 %v1736
    %1779 = vmatprep.subr.mxu0 0.0
    %1780 = vmatpush2.msra.mxu0 0.0
    %1781 = vmatprep.subr.mxu0 0.0
    %1782 = vmatpush2.msra.mxu0 0.0
    %1783 = vmatprep.subr.mxu0 0.0
    %1784 = vmatpush2.msra.mxu0 0.0
    %1785 = vmatprep.subr.mxu0 0.0
    %1786 = vmatpush2.msra.mxu0 0.0
    %1787 = vmatprep.subr.mxu0 0.0
    %1788 = vmatpush2.msra.mxu0 0.0
    %1789 = vmatprep.subr.mxu0 0.0
    %1790 = vmatpush2.msra.mxu0 0.0
    %1791 = vmatprep.subr.mxu0 0.0
    %1792 = vmatpush2.msra.mxu0 0.0
    %1793 = vmatprep.subr.mxu0 0.0
    %1794 = vmatpush2.msra.mxu0 0.0
    %1795 = vmatprep.subr.mxu0 0.0
    %1796 = vmatpush2.msra.mxu0 0.0
    %1797 = vmatprep.subr.mxu0 0.0
    %1798 = vmatpush2.msra.mxu0 0.0
    %1799 = vmatprep.subr.mxu0 0.0
    %1800 = vmatpush2.msra.mxu0 0.0
    %1801 = vmatprep.subr.mxu0 0.0
    %1802 = vmatpush2.msra.mxu0 0.0
    %1803 = vmatprep.subr.mxu0 0.0
    %1804 = vmatpush2.msra.mxu0 0.0
    %1805 = vmatprep.subr.mxu0 0.0
    %1806 = vmatpush2.msra.mxu0 0.0
    %1807 = vmatprep.subr.mxu0 0.0
    %1808 = vmatpush2.msra.mxu0 0.0
    %1809 = vmatprep.subr.mxu0 0.0
    %1810 = vmatpush2.msra.mxu0 0.0
    %1811 = vmatprep.mubr.f32.mxu0 0.0
    %1812 = vmatmul.mubr.f32.gmra.mxu0 %v1745
    %v1813 = vpop.f32.mrf.mxu0
    %v1814 = vadd.f32 0.0, %v1813
    %v1815 = vpop.f32.mrf.mxu0
    %1816 = vdwg.mxu0
    %v1818 = vsel %vm42, %v1295, 0
    %1820 = vmatprep.subr.mxu0 0.0
    %1821 = vmatpush1.msra.mxu0 0.0
    %1822 = vmatprep.subr.mxu0 0.0
    %1823 = vmatpush1.msra.mxu0 0.0
    %1824 = vmatprep.subr.mxu0 0.0
    %1825 = vmatpush1.msra.mxu0 0.0
    %1826 = vmatprep.subr.mxu0 0.0
    %1827 = vmatpush1.msra.mxu0 0.0
    %1828 = vmatprep.subr.mxu0 0.0
    %1829 = vmatpush1.msra.mxu0 0.0
    %1830 = vmatprep.subr.mxu0 0.0
    %1831 = vmatpush1.msra.mxu0 0.0
    %1832 = vmatprep.subr.mxu0 0.0
    %1833 = vmatpush1.msra.mxu0 0.0
    %1834 = vmatprep.subr.mxu0 0.0
    %1835 = vmatpush1.msra.mxu0 0.0
    %1836 = vmatprep.subr.mxu0 0.0
    %1837 = vmatpush1.msra.mxu0 0.0
    %1838 = vmatprep.subr.mxu0 0.0
    %1839 = vmatpush1.msra.mxu0 0.0
    %1840 = vmatprep.subr.mxu0 0.0
    %1841 = vmatpush1.msra.mxu0 0.0
    %1842 = vmatprep.subr.mxu0 0.0
    %1843 = vmatpush1.msra.mxu0 0.0
    %1844 = vmatprep.subr.mxu0 0.0
    %1845 = vmatpush1.msra.mxu0 0.0
    %1846 = vmatprep.subr.mxu0 0.0
    %1847 = vmatpush1.msra.mxu0 0.0
    %1848 = vmatprep.subr.mxu0 0.0
    %1849 = vmatpush1.msra.mxu0 0.0
    %1850 = vmatprep.subr.mxu0 0.0
    %1851 = vmatpush1.msra.mxu0 %v1737
    %1852 = vmatprep.subr.mxu0 0.0
    %1853 = vmatpush2.msra.mxu0 0.0
    %1854 = vmatprep.subr.mxu0 0.0
    %1855 = vmatpush2.msra.mxu0 0.0
    %1856 = vmatprep.subr.mxu0 0.0
    %1857 = vmatpush2.msra.mxu0 0.0
    %1858 = vmatprep.subr.mxu0 0.0
    %1859 = vmatpush2.msra.mxu0 0.0
    %1860 = vmatprep.subr.mxu0 0.0
    %1861 = vmatpush2.msra.mxu0 0.0
    %1862 = vmatprep.subr.mxu0 0.0
    %1863 = vmatpush2.msra.mxu0 0.0
    %1864 = vmatprep.subr.mxu0 0.0
    %1865 = vmatpush2.msra.mxu0 0.0
    %1866 = vmatprep.subr.mxu0 0.0
    %1867 = vmatpush2.msra.mxu0 0.0
    %1868 = vmatprep.subr.mxu0 0.0
    %1869 = vmatpush2.msra.mxu0 0.0
    %1870 = vmatprep.subr.mxu0 0.0
    %1871 = vmatpush2.msra.mxu0 0.0
    %1872 = vmatprep.subr.mxu0 0.0
    %1873 = vmatpush2.msra.mxu0 0.0
    %1874 = vmatprep.subr.mxu0 0.0
    %1875 = vmatpush2.msra.mxu0 0.0
    %1876 = vmatprep.subr.mxu0 0.0
    %1877 = vmatpush2.msra.mxu0 0.0
    %1878 = vmatprep.subr.mxu0 0.0
    %1879 = vmatpush2.msra.mxu0 0.0
    %1880 = vmatprep.subr.mxu0 0.0
    %1881 = vmatpush2.msra.mxu0 0.0
    %1882 = vmatprep.subr.mxu0 0.0
    %1883 = vmatpush2.msra.mxu0 0.0
    %1884 = vmatprep.mubr.f32.mxu0 0.0
    %1885 = vmatmul.mubr.f32.gmra.mxu0 %v1818
    %v1886 = vpop.f32.mrf.mxu0
    %v1887 = vadd.f32 0.0, %v1886
    %v1888 = vpop.f32.mrf.mxu0
    %1889 = vdwg.mxu0
    %v1891 = vsel %vm42, %v1368, 0
    %1893 = vmatprep.subr.mxu0 0.0
    %1894 = vmatpush1.msra.mxu0 0.0
    %1895 = vmatprep.subr.mxu0 0.0
    %1896 = vmatpush1.msra.mxu0 0.0
    %1897 = vmatprep.subr.mxu0 0.0
    %1898 = vmatpush1.msra.mxu0 0.0
    %1899 = vmatprep.subr.mxu0 0.0
    %1900 = vmatpush1.msra.mxu0 0.0
    %1901 = vmatprep.subr.mxu0 0.0
    %1902 = vmatpush1.msra.mxu0 0.0
    %1903 = vmatprep.subr.mxu0 0.0
    %1904 = vmatpush1.msra.mxu0 0.0
    %1905 = vmatprep.subr.mxu0 0.0
    %1906 = vmatpush1.msra.mxu0 0.0
    %1907 = vmatprep.subr.mxu0 0.0
    %1908 = vmatpush1.msra.mxu0 0.0
    %1909 = vmatprep.subr.mxu0 0.0
    %1910 = vmatpush1.msra.mxu0 0.0
    %1911 = vmatprep.subr.mxu0 0.0
    %1912 = vmatpush1.msra.mxu0 0.0
    %1913 = vmatprep.subr.mxu0 0.0
    %1914 = vmatpush1.msra.mxu0 0.0
    %1915 = vmatprep.subr.mxu0 0.0
    %1916 = vmatpush1.msra.mxu0 0.0
    %1917 = vmatprep.subr.mxu0 0.0
    %1918 = vmatpush1.msra.mxu0 0.0
    %1919 = vmatprep.subr.mxu0 0.0
    %1920 = vmatpush1.msra.mxu0 0.0
    %1921 = vmatprep.subr.mxu0 0.0
    %1922 = vmatpush1.msra.mxu0 0.0
    %1923 = vmatprep.subr.mxu0 0.0
    %1924 = vmatpush1.msra.mxu0 %v1738
    %1925 = vmatprep.subr.mxu0 0.0
    %1926 = vmatpush2.msra.mxu0 0.0
    %1927 = vmatprep.subr.mxu0 0.0
    %1928 = vmatpush2.msra.mxu0 0.0
    %1929 = vmatprep.subr.mxu0 0.0
    %1930 = vmatpush2.msra.mxu0 0.0
    %1931 = vmatprep.subr.mxu0 0.0
    %1932 = vmatpush2.msra.mxu0 0.0
    %1933 = vmatprep.subr.mxu0 0.0
    %1934 = vmatpush2.msra.mxu0 0.0
    %1935 = vmatprep.subr.mxu0 0.0
    %1936 = vmatpush2.msra.mxu0 0.0
    %1937 = vmatprep.subr.mxu0 0.0
    %1938 = vmatpush2.msra.mxu0 0.0
    %1939 = vmatprep.subr.mxu0 0.0
    %1940 = vmatpush2.msra.mxu0 0.0
    %1941 = vmatprep.subr.mxu0 0.0
    %1942 = vmatpush2.msra.mxu0 0.0
    %1943 = vmatprep.subr.mxu0 0.0
    %1944 = vmatpush2.msra.mxu0 0.0
    %1945 = vmatprep.subr.mxu0 0.0
    %1946 = vmatpush2.msra.mxu0 0.0
    %1947 = vmatprep.subr.mxu0 0.0
    %1948 = vmatpush2.msra.mxu0 0.0
    %1949 = vmatprep.subr.mxu0 0.0
    %1950 = vmatpush2.msra.mxu0 0.0
    %1951 = vmatprep.subr.mxu0 0.0
    %1952 = vmatpush2.msra.mxu0 0.0
    %1953 = vmatprep.subr.mxu0 0.0
    %1954 = vmatpush2.msra.mxu0 0.0
    %1955 = vmatprep.subr.mxu0 0.0
    %1956 = vmatpush2.msra.mxu0 0.0
    %1957 = vmatprep.mubr.f32.mxu0 0.0
    %1958 = vmatmul.mubr.f32.gmra.mxu0 %v1891
    %v1959 = vpop.f32.mrf.mxu0
    %v1960 = vadd.f32 0.0, %v1959
    %v1961 = vpop.f32.mrf.mxu0
    %1962 = vdwg.mxu0
    %v1964 = vsel %vm42, %v1441, 0
    %1966 = vmatprep.subr.mxu0 0.0
    %1967 = vmatpush1.msra.mxu0 0.0
    %1968 = vmatprep.subr.mxu0 0.0
    %1969 = vmatpush1.msra.mxu0 0.0
    %1970 = vmatprep.subr.mxu0 0.0
    %1971 = vmatpush1.msra.mxu0 0.0
    %1972 = vmatprep.subr.mxu0 0.0
    %1973 = vmatpush1.msra.mxu0 0.0
    %1974 = vmatprep.subr.mxu0 0.0
    %1975 = vmatpush1.msra.mxu0 0.0
    %1976 = vmatprep.subr.mxu0 0.0
    %1977 = vmatpush1.msra.mxu0 0.0
    %1978 = vmatprep.subr.mxu0 0.0
    %1979 = vmatpush1.msra.mxu0 0.0
    %1980 = vmatprep.subr.mxu0 0.0
    %1981 = vmatpush1.msra.mxu0 0.0
    %1982 = vmatprep.subr.mxu0 0.0
    %1983 = vmatpush1.msra.mxu0 0.0
    %1984 = vmatprep.subr.mxu0 0.0
    %1985 = vmatpush1.msra.mxu0 0.0
    %1986 = vmatprep.subr.mxu0 0.0
    %1987 = vmatpush1.msra.mxu0 0.0
    %1988 = vmatprep.subr.mxu0 0.0
    %1989 = vmatpush1.msra.mxu0 0.0
    %1990 = vmatprep.subr.mxu0 0.0
    %1991 = vmatpush1.msra.mxu0 0.0
    %1992 = vmatprep.subr.mxu0 0.0
    %1993 = vmatpush1.msra.mxu0 0.0
    %1994 = vmatprep.subr.mxu0 0.0
    %1995 = vmatpush1.msra.mxu0 0.0
    %1996 = vmatprep.subr.mxu0 0.0
    %1997 = vmatpush1.msra.mxu0 %v1739
    %1998 = vmatprep.subr.mxu0 0.0
    %1999 = vmatpush2.msra.mxu0 0.0
    %2000 = vmatprep.subr.mxu0 0.0
    %2001 = vmatpush2.msra.mxu0 0.0
    %2002 = vmatprep.subr.mxu0 0.0
    %2003 = vmatpush2.msra.mxu0 0.0
    %2004 = vmatprep.subr.mxu0 0.0
    %2005 = vmatpush2.msra.mxu0 0.0
    %2006 = vmatprep.subr.mxu0 0.0
    %2007 = vmatpush2.msra.mxu0 0.0
    %2008 = vmatprep.subr.mxu0 0.0
    %2009 = vmatpush2.msra.mxu0 0.0
    %2010 = vmatprep.subr.mxu0 0.0
    %2011 = vmatpush2.msra.mxu0 0.0
    %2012 = vmatprep.subr.mxu0 0.0
    %2013 = vmatpush2.msra.mxu0 0.0
    %2014 = vmatprep.subr.mxu0 0.0
    %2015 = vmatpush2.msra.mxu0 0.0
    %2016 = vmatprep.subr.mxu0 0.0
    %2017 = vmatpush2.msra.mxu0 0.0
    %2018 = vmatprep.subr.mxu0 0.0
    %2019 = vmatpush2.msra.mxu0 0.0
    %2020 = vmatprep.subr.mxu0 0.0
    %2021 = vmatpush2.msra.mxu0 0.0
    %2022 = vmatprep.subr.mxu0 0.0
    %2023 = vmatpush2.msra.mxu0 0.0
    %2024 = vmatprep.subr.mxu0 0.0
    %2025 = vmatpush2.msra.mxu0 0.0
    %2026 = vmatprep.subr.mxu0 0.0
    %2027 = vmatpush2.msra.mxu0 0.0
    %2028 = vmatprep.subr.mxu0 0.0
    %2029 = vmatpush2.msra.mxu0 0.0
    %2030 = vmatprep.mubr.f32.mxu0 0.0
    %2031 = vmatmul.mubr.f32.gmra.mxu0 %v1964
    %v2032 = vpop.f32.mrf.mxu0
    %v2033 = vadd.f32 0.0, %v2032
    %v2034 = vpop.f32.mrf.mxu0
    %2035 = vdwg.mxu0
    %v2037 = vsel %vm42, %v1514, 0
    %2039 = vmatprep.subr.mxu0 0.0
    %2040 = vmatpush1.msra.mxu0 0.0
    %2041 = vmatprep.subr.mxu0 0.0
    %2042 = vmatpush1.msra.mxu0 0.0
    %2043 = vmatprep.subr.mxu0 0.0
    %2044 = vmatpush1.msra.mxu0 0.0
    %2045 = vmatprep.subr.mxu0 0.0
    %2046 = vmatpush1.msra.mxu0 0.0
    %2047 = vmatprep.subr.mxu0 0.0
    %2048 = vmatpush1.msra.mxu0 0.0
    %2049 = vmatprep.subr.mxu0 0.0
    %2050 = vmatpush1.msra.mxu0 0.0
    %2051 = vmatprep.subr.mxu0 0.0
    %2052 = vmatpush1.msra.mxu0 0.0
    %2053 = vmatprep.subr.mxu0 0.0
    %2054 = vmatpush1.msra.mxu0 0.0
    %2055 = vmatprep.subr.mxu0 0.0
    %2056 = vmatpush1.msra.mxu0 0.0
    %2057 = vmatprep.subr.mxu0 0.0
    %2058 = vmatpush1.msra.mxu0 0.0
    %2059 = vmatprep.subr.mxu0 0.0
    %2060 = vmatpush1.msra.mxu0 0.0
    %2061 = vmatprep.subr.mxu0 0.0
    %2062 = vmatpush1.msra.mxu0 0.0
    %2063 = vmatprep.subr.mxu0 0.0
    %2064 = vmatpush1.msra.mxu0 0.0
    %2065 = vmatprep.subr.mxu0 0.0
    %2066 = vmatpush1.msra.mxu0 0.0
    %2067 = vmatprep.subr.mxu0 0.0
    %2068 = vmatpush1.msra.mxu0 0.0
    %2069 = vmatprep.subr.mxu0 0.0
    %2070 = vmatpush1.msra.mxu0 %v1740
    %2071 = vmatprep.subr.mxu0 0.0
    %2072 = vmatpush2.msra.mxu0 0.0
    %2073 = vmatprep.subr.mxu0 0.0
    %2074 = vmatpush2.msra.mxu0 0.0
    %2075 = vmatprep.subr.mxu0 0.0
    %2076 = vmatpush2.msra.mxu0 0.0
    %2077 = vmatprep.subr.mxu0 0.0
    %2078 = vmatpush2.msra.mxu0 0.0
    %2079 = vmatprep.subr.mxu0 0.0
    %2080 = vmatpush2.msra.mxu0 0.0
    %2081 = vmatprep.subr.mxu0 0.0
    %2082 = vmatpush2.msra.mxu0 0.0
    %2083 = vmatprep.subr.mxu0 0.0
    %2084 = vmatpush2.msra.mxu0 0.0
    %2085 = vmatprep.subr.mxu0 0.0
    %2086 = vmatpush2.msra.mxu0 0.0
    %2087 = vmatprep.subr.mxu0 0.0
    %2088 = vmatpush2.msra.mxu0 0.0
    %2089 = vmatprep.subr.mxu0 0.0
    %2090 = vmatpush2.msra.mxu0 0.0
    %2091 = vmatprep.subr.mxu0 0.0
    %2092 = vmatpush2.msra.mxu0 0.0
    %2093 = vmatprep.subr.mxu0 0.0
    %2094 = vmatpush2.msra.mxu0 0.0
    %2095 = vmatprep.subr.mxu0 0.0
    %2096 = vmatpush2.msra.mxu0 0.0
    %2097 = vmatprep.subr.mxu0 0.0
    %2098 = vmatpush2.msra.mxu0 0.0
    %2099 = vmatprep.subr.mxu0 0.0
    %2100 = vmatpush2.msra.mxu0 0.0
    %2101 = vmatprep.subr.mxu0 0.0
    %2102 = vmatpush2.msra.mxu0 0.0
    %2103 = vmatprep.mubr.f32.mxu0 0.0
    %2104 = vmatmul.mubr.f32.gmra.mxu0 %v2037
    %v2105 = vpop.f32.mrf.mxu0
    %v2106 = vadd.f32 0.0, %v2105
    %v2107 = vpop.f32.mrf.mxu0
    %2108 = vdwg.mxu0
    %v2110 = vsel %vm42, %v1587, 0
    %2112 = vmatprep.subr.mxu0 0.0
    %2113 = vmatpush1.msra.mxu0 0.0
    %2114 = vmatprep.subr.mxu0 0.0
    %2115 = vmatpush1.msra.mxu0 0.0
    %2116 = vmatprep.subr.mxu0 0.0
    %2117 = vmatpush1.msra.mxu0 0.0
    %2118 = vmatprep.subr.mxu0 0.0
    %2119 = vmatpush1.msra.mxu0 0.0
    %2120 = vmatprep.subr.mxu0 0.0
    %2121 = vmatpush1.msra.mxu0 0.0
    %2122 = vmatprep.subr.mxu0 0.0
    %2123 = vmatpush1.msra.mxu0 0.0
    %2124 = vmatprep.subr.mxu0 0.0
    %2125 = vmatpush1.msra.mxu0 0.0
    %2126 = vmatprep.subr.mxu0 0.0
    %2127 = vmatpush1.msra.mxu0 0.0
    %2128 = vmatprep.subr.mxu0 0.0
    %2129 = vmatpush1.msra.mxu0 0.0
    %2130 = vmatprep.subr.mxu0 0.0
    %2131 = vmatpush1.msra.mxu0 0.0
    %2132 = vmatprep.subr.mxu0 0.0
    %2133 = vmatpush1.msra.mxu0 0.0
    %2134 = vmatprep.subr.mxu0 0.0
    %2135 = vmatpush1.msra.mxu0 0.0
    %2136 = vmatprep.subr.mxu0 0.0
    %2137 = vmatpush1.msra.mxu0 0.0
    %2138 = vmatprep.subr.mxu0 0.0
    %2139 = vmatpush1.msra.mxu0 0.0
    %2140 = vmatprep.subr.mxu0 0.0
    %2141 = vmatpush1.msra.mxu0 0.0
    %2142 = vmatprep.subr.mxu0 0.0
    %2143 = vmatpush1.msra.mxu0 %v1741
    %2144 = vmatprep.subr.mxu0 0.0
    %2145 = vmatpush2.msra.mxu0 0.0
    %2146 = vmatprep.subr.mxu0 0.0
    %2147 = vmatpush2.msra.mxu0 0.0
    %2148 = vmatprep.subr.mxu0 0.0
    %2149 = vmatpush2.msra.mxu0 0.0
    %2150 = vmatprep.subr.mxu0 0.0
    %2151 = vmatpush2.msra.mxu0 0.0
    %2152 = vmatprep.subr.mxu0 0.0
    %2153 = vmatpush2.msra.mxu0 0.0
    %2154 = vmatprep.subr.mxu0 0.0
    %2155 = vmatpush2.msra.mxu0 0.0
    %2156 = vmatprep.subr.mxu0 0.0
    %2157 = vmatpush2.msra.mxu0 0.0
    %2158 = vmatprep.subr.mxu0 0.0
    %2159 = vmatpush2.msra.mxu0 0.0
    %2160 = vmatprep.subr.mxu0 0.0
    %2161 = vmatpush2.msra.mxu0 0.0
    %2162 = vmatprep.subr.mxu0 0.0
    %2163 = vmatpush2.msra.mxu0 0.0
    %2164 = vmatprep.subr.mxu0 0.0
    %2165 = vmatpush2.msra.mxu0 0.0
    %2166 = vmatprep.subr.mxu0 0.0
    %2167 = vmatpush2.msra.mxu0 0.0
    %2168 = vmatprep.subr.mxu0 0.0
    %2169 = vmatpush2.msra.mxu0 0.0
    %2170 = vmatprep.subr.mxu0 0.0
    %2171 = vmatpush2.msra.mxu0 0.0
    %2172 = vmatprep.subr.mxu0 0.0
    %2173 = vmatpush2.msra.mxu0 0.0
    %2174 = vmatprep.subr.mxu0 0.0
    %2175 = vmatpush2.msra.mxu0 0.0
    %2176 = vmatprep.mubr.f32.mxu0 0.0
    %2177 = vmatmul.mubr.f32.gmra.mxu0 %v2110
    %v2178 = vpop.f32.mrf.mxu0
    %v2179 = vadd.f32 0.0, %v2178
    %v2180 = vpop.f32.mrf.mxu0
    %2181 = vdwg.mxu0
    %v2183 = vsel %vm42, %v1660, 0
    %2185 = vmatprep.subr.mxu0 0.0
    %2186 = vmatpush1.msra.mxu0 0.0
    %2187 = vmatprep.subr.mxu0 0.0
    %2188 = vmatpush1.msra.mxu0 0.0
    %2189 = vmatprep.subr.mxu0 0.0
    %2190 = vmatpush1.msra.mxu0 0.0
    %2191 = vmatprep.subr.mxu0 0.0
    %2192 = vmatpush1.msra.mxu0 0.0
    %2193 = vmatprep.subr.mxu0 0.0
    %2194 = vmatpush1.msra.mxu0 0.0
    %2195 = vmatprep.subr.mxu0 0.0
    %2196 = vmatpush1.msra.mxu0 0.0
    %2197 = vmatprep.subr.mxu0 0.0
    %2198 = vmatpush1.msra.mxu0 0.0
    %2199 = vmatprep.subr.mxu0 0.0
    %2200 = vmatpush1.msra.mxu0 0.0
    %2201 = vmatprep.subr.mxu0 0.0
    %2202 = vmatpush1.msra.mxu0 0.0
    %2203 = vmatprep.subr.mxu0 0.0
    %2204 = vmatpush1.msra.mxu0 0.0
    %2205 = vmatprep.subr.mxu0 0.0
    %2206 = vmatpush1.msra.mxu0 0.0
    %2207 = vmatprep.subr.mxu0 0.0
    %2208 = vmatpush1.msra.mxu0 0.0
    %2209 = vmatprep.subr.mxu0 0.0
    %2210 = vmatpush1.msra.mxu0 0.0
    %2211 = vmatprep.subr.mxu0 0.0
    %2212 = vmatpush1.msra.mxu0 0.0
    %2213 = vmatprep.subr.mxu0 0.0
    %2214 = vmatpush1.msra.mxu0 0.0
    %2215 = vmatprep.subr.mxu0 0.0
    %2216 = vmatpush1.msra.mxu0 %v1742
    %2217 = vmatprep.subr.mxu0 0.0
    %2218 = vmatpush2.msra.mxu0 0.0
    %2219 = vmatprep.subr.mxu0 0.0
    %2220 = vmatpush2.msra.mxu0 0.0
    %2221 = vmatprep.subr.mxu0 0.0
    %2222 = vmatpush2.msra.mxu0 0.0
    %2223 = vmatprep.subr.mxu0 0.0
    %2224 = vmatpush2.msra.mxu0 0.0
    %2225 = vmatprep.subr.mxu0 0.0
    %2226 = vmatpush2.msra.mxu0 0.0
    %2227 = vmatprep.subr.mxu0 0.0
    %2228 = vmatpush2.msra.mxu0 0.0
    %2229 = vmatprep.subr.mxu0 0.0
    %2230 = vmatpush2.msra.mxu0 0.0
    %2231 = vmatprep.subr.mxu0 0.0
    %2232 = vmatpush2.msra.mxu0 0.0
    %2233 = vmatprep.subr.mxu0 0.0
    %2234 = vmatpush2.msra.mxu0 0.0
    %2235 = vmatprep.subr.mxu0 0.0
    %2236 = vmatpush2.msra.mxu0 0.0
    %2237 = vmatprep.subr.mxu0 0.0
    %2238 = vmatpush2.msra.mxu0 0.0
    %2239 = vmatprep.subr.mxu0 0.0
    %2240 = vmatpush2.msra.mxu0 0.0
    %2241 = vmatprep.subr.mxu0 0.0
    %2242 = vmatpush2.msra.mxu0 0.0
    %2243 = vmatprep.subr.mxu0 0.0
    %2244 = vmatpush2.msra.mxu0 0.0
    %2245 = vmatprep.subr.mxu0 0.0
    %2246 = vmatpush2.msra.mxu0 0.0
    %2247 = vmatprep.subr.mxu0 0.0
    %2248 = vmatpush2.msra.mxu0 0.0
    %2249 = vmatprep.mubr.f32.mxu0 0.0
    %2250 = vmatmul.mubr.f32.gmra.mxu0 %v2183
    %v2251 = vpop.f32.mrf.mxu0
    %v2252 = vadd.f32 0.0, %v2251
    %v2253 = vpop.f32.mrf.mxu0
    %2254 = vdwg.mxu0
    %v2256 = vsel %vm42, %v1733, 0
    %2258 = vmatprep.subr.mxu0 0.0
    %2259 = vmatpush1.msra.mxu0 0.0
    %2260 = vmatprep.subr.mxu0 0.0
    %2261 = vmatpush1.msra.mxu0 0.0
    %2262 = vmatprep.subr.mxu0 0.0
    %2263 = vmatpush1.msra.mxu0 0.0
    %2264 = vmatprep.subr.mxu0 0.0
    %2265 = vmatpush1.msra.mxu0 0.0
    %2266 = vmatprep.subr.mxu0 0.0
    %2267 = vmatpush1.msra.mxu0 0.0
    %2268 = vmatprep.subr.mxu0 0.0
    %2269 = vmatpush1.msra.mxu0 0.0
    %2270 = vmatprep.subr.mxu0 0.0
    %2271 = vmatpush1.msra.mxu0 0.0
    %2272 = vmatprep.subr.mxu0 0.0
    %2273 = vmatpush1.msra.mxu0 0.0
    %2274 = vmatprep.subr.mxu0 0.0
    %2275 = vmatpush1.msra.mxu0 0.0
    %2276 = vmatprep.subr.mxu0 0.0
    %2277 = vmatpush1.msra.mxu0 0.0
    %2278 = vmatprep.subr.mxu0 0.0
    %2279 = vmatpush1.msra.mxu0 0.0
    %2280 = vmatprep.subr.mxu0 0.0
    %2281 = vmatpush1.msra.mxu0 0.0
    %2282 = vmatprep.subr.mxu0 0.0
    %2283 = vmatpush1.msra.mxu0 0.0
    %2284 = vmatprep.subr.mxu0 0.0
    %2285 = vmatpush1.msra.mxu0 0.0
    %2286 = vmatprep.subr.mxu0 0.0
    %2287 = vmatpush1.msra.mxu0 0.0
    %2288 = vmatprep.subr.mxu0 0.0
    %2289 = vmatpush1.msra.mxu0 %v1743
    %2290 = vmatprep.subr.mxu0 0.0
    %2291 = vmatpush2.msra.mxu0 0.0
    %2292 = vmatprep.subr.mxu0 0.0
    %2293 = vmatpush2.msra.mxu0 0.0
    %2294 = vmatprep.subr.mxu0 0.0
    %2295 = vmatpush2.msra.mxu0 0.0
    %2296 = vmatprep.subr.mxu0 0.0
    %2297 = vmatpush2.msra.mxu0 0.0
    %2298 = vmatprep.subr.mxu0 0.0
    %2299 = vmatpush2.msra.mxu0 0.0
    %2300 = vmatprep.subr.mxu0 0.0
    %2301 = vmatpush2.msra.mxu0 0.0
    %2302 = vmatprep.subr.mxu0 0.0
    %2303 = vmatpush2.msra.mxu0 0.0
    %2304 = vmatprep.subr.mxu0 0.0
    %2305 = vmatpush2.msra.mxu0 0.0
    %2306 = vmatprep.subr.mxu0 0.0
    %2307 = vmatpush2.msra.mxu0 0.0
    %2308 = vmatprep.subr.mxu0 0.0
    %2309 = vmatpush2.msra.mxu0 0.0
    %2310 = vmatprep.subr.mxu0 0.0
    %2311 = vmatpush2.msra.mxu0 0.0
    %2312 = vmatprep.subr.mxu0 0.0
    %2313 = vmatpush2.msra.mxu0 0.0
    %2314 = vmatprep.subr.mxu0 0.0
    %2315 = vmatpush2.msra.mxu0 0.0
    %2316 = vmatprep.subr.mxu0 0.0
    %2317 = vmatpush2.msra.mxu0 0.0
    %2318 = vmatprep.subr.mxu0 0.0
    %2319 = vmatpush2.msra.mxu0 0.0
    %2320 = vmatprep.subr.mxu0 0.0
    %2321 = vmatpush2.msra.mxu0 0.0
    %2322 = vmatprep.mubr.f32.mxu0 0.0
    %2323 = vmatmul.mubr.f32.gmra.mxu0 %v2256
    %v2324 = vpop.f32.mrf.mxu0
    %v2325 = vadd.f32 0.0, %v2324
    %v2326 = vpop.f32.mrf.mxu0
    %2327 = vdwg.mxu0
    %vm2328 = vcmask 261120
    %v2329 = vsel %vm2328, %v1814, 0.0
    %v2330 = vsel %vm2328, %v1887, 0.0
    %v2331 = vadd.f32 %v2329, %v2330
    %v2332 = vsel %vm2328, %v1960, 0.0
    %v2333 = vadd.f32 %v2331, %v2332
    %v2334 = vsel %vm2328, %v2033, 0.0
    %v2335 = vadd.f32 %v2333, %v2334
    %v2336 = vsel %vm2328, %v2106, 0.0
    %v2337 = vsel %vm2328, %v2179, 0.0
    %v2338 = vadd.f32 %v2336, %v2337
    %v2339 = vsel %vm2328, %v2252, 0.0
    %v2340 = vadd.f32 %v2338, %v2339
    %v2341 = vsel %vm2328, %v2325, 0.0
    %v2342 = vadd.f32 %v2340, %v2341
    %v2343 = vld [vmem:[%s8] sm:$0x1]
    %v2345 = vlaneseq
    %v2346 = vshrl.u32 %v2345, 7
    %v2347 = vsub.s32 0, %v2346
    %v2348 = vrot.slane %v2343, %v2347
    %v2350 = vadd.f32 %v2335, %v2348
    %v2351 = vadd.f32 %v2342, %v2348
    %2352 = vst.msk [vmem:[#allocation2] sm:$0xff] %vm2328, %v2350
    %2353 = vst.msk [vmem:[#allocation2 + $0x8] sm:$0xff] %vm2328, %v2351
    // Predicated region
    $region38: #{tpu_custom_call.1} parent=1 // pred_check
      _
    $region39: #{tpu_custom_call.1} parent=1 // pred_check_branch
      %2355 = sbr.rel (0) target = $region41
    $region40: #{tpu_custom_call.1} parent=1 // pred_region
      %s2357 = ssub.s32 256, 256
      %2358 = vsyncadd [#allocation3], %s2357
      %s2359 = sshll.u32 [#allocation2], 4
      %s2360 = int_to_ptr.vmem [resolvable:$true] %s2359
      %2365 = dma.vmem_to_hbm [thread:$0]  %s2360, 256, %s9, [#allocation3], 128, 128, 8
    $region41: #{tpu_custom_call.1} parent=1 // pred_fallthru
      _
    // Predicated region
    $region42: #{tpu_custom_call.1} parent=1 // pred_check
      _
    $region43: #{tpu_custom_call.1} parent=1 // pred_check_branch
      %2367 = sbr.rel (0) target = $region45
    $region44: #{tpu_custom_call.1} parent=1 // pred_region
      %2368 = dma.done [#allocation3], 256
    $region45: #{tpu_custom_call.1} parent=1 // pred_fallthru
      _
    %2369 = vsyncpa [#allocation3], 1

</llo_original>
